<compile_context>
chip_gen: v6e
topology: v6e:2x2x1
jax: 0.10.0
libtpu: 0.0.40
codegen_flags: <defaults>
</compile_context>

<pallas_src>
import jax
import jax.numpy as jnp
from jax.experimental import pallas as pl
from jax.experimental.pallas import tpu as pltpu

H = 128            # hidden size
IN = 4096          # input size (64*64 flattened face image)
NCLS = 40          # number of classes
OUT_PAD = 128      # lane-dense padded FC output width
G3 = 3 * H         # pruned gate width: [i, g, o] (f-gate is dead for c_prev == 0)


def _lstm_fc_kernel(x_ref, wih0t_ref, b0_ref, wih1t_ref, b1_ref,
                    wfct_ref, bfc_ref, out_ref, g0_acc):
    k = pl.program_id(1)

    @pl.when(k == 0)
    def _():
        g0_acc[...] = jnp.zeros_like(g0_acc)

    # ---- LSTM layer 0 partial matmul over this K chunk ----
    # f32 -> bf16 cast happens on-chip (cheap VPU op hidden under the MXU pass),
    # so the wrapper never materializes a bf16 copy of x in HBM.
    x = x_ref[...].astype(jnp.bfloat16)                  # (BT, IN/KC)
    g0_acc[...] += jnp.dot(x, wih0t_ref[...],
                           preferred_element_type=jnp.float32)

    @pl.when(k == pl.num_programs(1) - 1)
    def _():
        # ---- finish layer 0 (one timestep, h0 = c0 = 0) ----
        g0 = g0_acc[...] + b0_ref[...]                   # (BT, 384) f32
        i0 = jax.nn.sigmoid(g0[:, 0 * H:1 * H])
        gg0 = jnp.tanh(g0[:, 1 * H:2 * H])
        o0 = jax.nn.sigmoid(g0[:, 2 * H:3 * H])
        h1 = o0 * jnp.tanh(i0 * gg0)                     # (BT, 128) f32

        # ---- LSTM layer 1 (one timestep, h0 = c0 = 0) ----
        g1 = jnp.dot(h1.astype(jnp.bfloat16), wih1t_ref[...],
                     preferred_element_type=jnp.float32) + b1_ref[...]
        i1 = jax.nn.sigmoid(g1[:, 0 * H:1 * H])
        gg1 = jnp.tanh(g1[:, 1 * H:2 * H])
        o1 = jax.nn.sigmoid(g1[:, 2 * H:3 * H])
        h2 = o1 * jnp.tanh(i1 * gg1)                     # (BT, 128) f32

        # ---- FC head (padded to 128 lanes): (BT, 128) @ (128, 128) + b ----
        out_ref[...] = jnp.dot(h2.astype(jnp.bfloat16), wfct_ref[...],
                               preferred_element_type=jnp.float32) + bfc_ref[...]


def _keep_igo(w):
    """Drop the dead f-gate block (PyTorch gate order is i, f, g, o)."""
    return jnp.concatenate([w[0 * H:1 * H], w[2 * H:3 * H], w[3 * H:4 * H]], axis=0)


def prepare_params(params):
    """One-time conversion of PyTorch-layout params to kernel layout.

    Call this once after loading/initializing parameters — NOT per forward call —
    so the layer-0 transpose/prune/cast is not re-materialized on every step.
    """
    b0_full = params["b_ih_l0"] + params["b_hh_l0"]
    b1_full = params["b_ih_l1"] + params["b_hh_l1"]
    wih0t = _keep_igo(params["w_ih_l0"]).T.astype(jnp.bfloat16)       # (4096, 384)
    b0 = _keep_igo(b0_full.reshape(4 * H, 1)).reshape(1, G3).astype(jnp.float32)
    wih1t = _keep_igo(params["w_ih_l1"]).T.astype(jnp.bfloat16)       # (128, 384)
    b1 = _keep_igo(b1_full.reshape(4 * H, 1)).reshape(1, G3).astype(jnp.float32)
    # FC padded to a lane-dense 128-wide output.
    wfct = jnp.zeros((H, OUT_PAD), jnp.float32).at[:, :NCLS].set(
        params["w_fc"].T.astype(jnp.float32)).astype(jnp.bfloat16)    # (128, 128)
    bfc = jnp.zeros((1, OUT_PAD), jnp.float32).at[:, :NCLS].set(
        params["b_fc"].astype(jnp.float32))
    return {"wih0t": wih0t, "b0": b0, "wih1t": wih1t, "b1": b1,
            "wfct": wfct, "bfc": bfc}


def _round_up(n, m):
    return ((n + m - 1) // m) * m


def _choose_tiling(B):
    """Balanced batch tiles (multiple of 8); K-split only for single-tile grids."""
    b8 = _round_up(B, 8)
    cap = 256                                # per-tile row cap
    num_tiles = -(-b8 // cap)                # ceil div
    bt = _round_up(-(-b8 // num_tiles), 8)   # balanced tile size (no ~2x pad waste)
    # Single batch tile: stream the layer-0 weight in 4 K-chunks so its DMA hides
    # behind the MXU.  Multi-tile: keep the weight resident (constant block index)
    # so it is fetched exactly once, not once per batch tile.
    kc = 4 if num_tiles == 1 else 1
    return bt, num_tiles, kc


def lstm_forward(x, prepped):
    """x: (B, 64, 64) or (B, 1, 64, 64) float32 -> (B, 40) float32."""
    B = x.shape[0]
    x2d = x.reshape(B, -1)                       # stays f32; bf16 cast is in-kernel

    bt, num_tiles, kc = _choose_tiling(B)
    B_pad = bt * num_tiles
    if B_pad != B:
        x2d = jnp.pad(x2d, ((0, B_pad - B), (0, 0)))
    kchunk = IN // kc

    resident = lambda i, k: (0, 0)   # weights/biases resident across all grid steps
    cost = pl.CostEstimate(
        flops=2 * B_pad * (IN * G3 + H * G3 + H * OUT_PAD),
        transcendentals=8 * B_pad * H,
        bytes_accessed=(B_pad * IN * 4            # x (f32)
                        + IN * G3 * 2 + H * G3 * 2 + H * OUT_PAD * 2  # bf16 weights
                        + 2 * G3 * 4 + OUT_PAD * 4                    # biases
                        + B_pad * OUT_PAD * 4),   # output
    )

    out = pl.pallas_call(
        _lstm_fc_kernel,
        out_shape=jax.ShapeDtypeStruct((B_pad, OUT_PAD), jnp.float32),
        grid=(num_tiles, kc),
        in_specs=[
            pl.BlockSpec((bt, kchunk), lambda i, k: (i, k)),   # x batch/K tile (f32)
            pl.BlockSpec((kchunk, G3), lambda i, k: (k, 0)),   # W_ih0 chunk (pruned, T)
            pl.BlockSpec((1, G3), resident),                   # folded bias layer 0
            pl.BlockSpec((H, G3), resident),                   # W_ih1 (pruned, T)
            pl.BlockSpec((1, G3), resident),                   # folded bias layer 1
            pl.BlockSpec((H, OUT_PAD), resident),              # FC weight (padded, T)
            pl.BlockSpec((1, OUT_PAD), resident),              # FC bias (padded)
        ],
        out_specs=pl.BlockSpec((bt, OUT_PAD), lambda i, k: (i, 0)),
        scratch_shapes=[pltpu.VMEM((bt, G3), jnp.float32)],    # layer-0 gate accumulator
        compiler_params=pltpu.CompilerParams(
            dimension_semantics=("parallel", "arbitrary"),
            vmem_limit_bytes=32 << 20,
        ),
        cost_estimate=cost,
    )(x2d, prepped["wih0t"], prepped["b0"], prepped["wih1t"], prepped["b1"],
      prepped["wfct"], prepped["bfc"])
    return out[:B, :NCLS]


def init_params(key):
    """Deterministic init matching PyTorch parameter shapes (uniform(-k, k), k=1/sqrt(H))."""
    k = 1.0 / jnp.sqrt(jnp.float32(H))
    keys = jax.random.split(key, 10)
    u = lambda kk, shape: jax.random.uniform(kk, shape, jnp.float32, -k, k)
    return {
        "w_ih_l0": u(keys[0], (4 * H, IN)),
        "w_hh_l0": u(keys[1], (4 * H, H)),
        "b_ih_l0": u(keys[2], (4 * H,)),
        "b_hh_l0": u(keys[3], (4 * H,)),
        "w_ih_l1": u(keys[4], (4 * H, H)),
        "w_hh_l1": u(keys[5], (4 * H, H)),
        "b_ih_l1": u(keys[6], (4 * H,)),
        "b_hh_l1": u(keys[7], (4 * H,)),
        "w_fc":    u(keys[8], (NCLS, H)),
        "b_fc":    u(keys[9], (NCLS,)),
    }


def _reference_forward(x, p):
    """Pure-JAX f32 reference of the full PyTorch forward (seq_len == 1)."""
    B = x.shape[0]
    xx = x.reshape(B, -1).astype(jnp.float32)
    h = jnp.zeros((B, H), jnp.float32)
    c = jnp.zeros((B, H), jnp.float32)

    def cell(inp, h, c, w_ih, w_hh, b_ih, b_hh):
        g = inp @ w_ih.T + h @ w_hh.T + b_ih + b_hh
        i, f, gg, o = jnp.split(g, 4, axis=-1)
        i, f, o = jax.nn.sigmoid(i), jax.nn.sigmoid(f), jax.nn.sigmoid(o)
        c_new = f * c + i * jnp.tanh(gg)
        return o * jnp.tanh(c_new), c_new

    h1, _ = cell(xx, h, c, p["w_ih_l0"], p["w_hh_l0"], p["b_ih_l0"], p["b_hh_l0"])
    h2, _ = cell(h1, h, c, p["w_ih_l1"], p["w_hh_l1"], p["b_ih_l1"], p["b_hh_l1"])
    return h2 @ p["w_fc"].T + p["b_fc"]


if __name__ == "__main__":
    key = jax.random.PRNGKey(0)
    kx, kp = jax.random.split(key)
    # Face images: batch=2, 64x64 grayscale -> flattened to 4096 features.
    x = jax.random.normal(kx, (2, 64, 64), jnp.float32)
    params = init_params(kp)
    prepped = prepare_params(params)          # one-time weight conversion

    out = lstm_forward(x, prepped)
    out = jax.block_until_ready(out)

    ref = _reference_forward(x, params)
    assert out.shape == (2, NCLS)
    # bf16 weights (f32 accumulate) vs. the f32 reference -> looser tolerance.
    assert jnp.allclose(out, ref, atol=5e-2, rtol=5e-2), (
        float(jnp.max(jnp.abs(out - ref))))
    print("KERNEL_OK")
</pallas_src>

<mosaic_0001>
module attributes {stable_mosaic.version = 11 : i64} {
  func.func @_lstm_fc_kernel(%arg0: i32, %arg1: i32, %arg2: memref<8x1024xf32, #tpu.memory_space<vmem>>, %arg3: memref<1024x384xbf16, #tpu.memory_space<vmem>>, %arg4: memref<1x384xf32, #tpu.memory_space<vmem>>, %arg5: memref<128x384xbf16, #tpu.memory_space<vmem>>, %arg6: memref<1x384xf32, #tpu.memory_space<vmem>>, %arg7: memref<128x128xbf16, #tpu.memory_space<vmem>>, %arg8: memref<1x128xf32, #tpu.memory_space<vmem>>, %arg9: memref<8x128xf32, #tpu.memory_space<vmem>>, %arg10: memref<8x384xf32, #tpu.memory_space<vmem>>) attributes {dimension_semantics = [#tpu.dimension_semantics<parallel>, #tpu.dimension_semantics<arbitrary>], iteration_bounds = array<i64: 1, 4>, scalar_prefetch = 0 : i64, scratch_operands = 1 : i64, tpu.core_type = #tpu.core_type<tc>, window_params = [{transform_indices = @transform_0, window_bounds = array<i64: 8, 1024>}, {transform_indices = @transform_1, window_bounds = array<i64: 1024, 384>}, {pipeline_mode = #tpu.pipeline_mode<synchronous>, transform_indices = @transform_2, window_bounds = array<i64: 1, 384>}, {pipeline_mode = #tpu.pipeline_mode<synchronous>, transform_indices = @transform_3, window_bounds = array<i64: 128, 384>}, {pipeline_mode = #tpu.pipeline_mode<synchronous>, transform_indices = @transform_4, window_bounds = array<i64: 1, 384>}, {pipeline_mode = #tpu.pipeline_mode<synchronous>, transform_indices = @transform_5, window_bounds = array<i64: 128, 128>}, {pipeline_mode = #tpu.pipeline_mode<synchronous>, transform_indices = @transform_6, window_bounds = array<i64: 1, 128>}, {transform_indices = @transform_7, window_bounds = array<i64: 8, 128>}]} {
    %c0_i32 = arith.constant 0 : i32
    %0 = arith.cmpi eq, %arg1, %c0_i32 : i32
    %1 = arith.extui %0 : i1 to i32
    %c0_i32_0 = arith.constant 0 : i32
    %2 = arith.cmpi ne, %1, %c0_i32_0 : i32
    scf.if %2 {
      %cst_9 = arith.constant 0.000000e+00 : f32
      %13 = vector.broadcast %cst_9 : f32 to vector<8x384xf32>
      %c0_10 = arith.constant 0 : index
      %c0_11 = arith.constant 0 : index
      %14 = vector.load %arg10[%c0_10, %c0_11] : memref<8x384xf32, #tpu.memory_space<vmem>>, vector<8x384xf32>
      tpu.vector_store %arg10[%c0_10, %c0_11], %13 {strides = array<i32>} : memref<8x384xf32, #tpu.memory_space<vmem>>, vector<8x384xf32>,
    } else {
    }
    %c0 = arith.constant 0 : index
    %c0_1 = arith.constant 0 : index
    %3 = vector.load %arg2[%c0, %c0_1] : memref<8x1024xf32, #tpu.memory_space<vmem>>, vector<8x1024xf32>
    %4 = arith.truncf %3 : vector<8x1024xf32> to vector<8x1024xbf16>
    %c0_2 = arith.constant 0 : index
    %c0_3 = arith.constant 0 : index
    %5 = vector.load %arg10[%c0_2, %c0_3] : memref<8x384xf32, #tpu.memory_space<vmem>>, vector<8x384xf32>
    %c0_4 = arith.constant 0 : index
    %c0_5 = arith.constant 0 : index
    %6 = vector.load %arg3[%c0_4, %c0_5] : memref<1024x384xbf16, #tpu.memory_space<vmem>>, vector<1024x384xbf16>
    %cst = arith.constant dense<0.000000e+00> : vector<8x384xf32>
    %7 = tpu.matmul %4, %6, %cst {dimension_numbers = #tpu.dot_dimension_numbers<[1], [0], [0], [1], [0, 0, 1, 1], [], []>} : vector<8x1024xbf16>, vector<1024x384xbf16>, vector<8x384xf32> -> vector<8x384xf32>
    %8 = arith.addf %5, %7 : vector<8x384xf32>
    %c0_6 = arith.constant 0 : index
    %c0_7 = arith.constant 0 : index
    %9 = vector.load %arg10[%c0_6, %c0_7] : memref<8x384xf32, #tpu.memory_space<vmem>>, vector<8x384xf32>
    tpu.vector_store %arg10[%c0_6, %c0_7], %8 {strides = array<i32>} : memref<8x384xf32, #tpu.memory_space<vmem>>, vector<8x384xf32>,
    %c3_i32 = arith.constant 3 : i32
    %10 = arith.cmpi eq, %arg1, %c3_i32 : i32
    %11 = arith.extui %10 : i1 to i32
    %c0_i32_8 = arith.constant 0 : i32
    %12 = arith.cmpi ne, %11, %c0_i32_8 : i32
    scf.if %12 {
      %c0_9 = arith.constant 0 : index
      %c0_10 = arith.constant 0 : index
      %13 = vector.load %arg10[%c0_9, %c0_10] : memref<8x384xf32, #tpu.memory_space<vmem>>, vector<8x384xf32>
      %c0_11 = arith.constant 0 : index
      %c0_12 = arith.constant 0 : index
      %14 = vector.load %arg4[%c0_11, %c0_12] : memref<1x384xf32, #tpu.memory_space<vmem>>, vector<1x384xf32>
      %15 = vector.broadcast %14 : vector<1x384xf32> to vector<8x384xf32>
      %16 = arith.addf %13, %15 : vector<8x384xf32>
      %17 = vector.extract_strided_slice %16 {offsets = [0, 0], sizes = [8, 128], strides = [1, 1]} : vector<8x384xf32> to vector<8x128xf32>
      %18 = arith.negf %17 : vector<8x128xf32>
      %19 = math.exp %18 : vector<8x128xf32>
      %cst_13 = arith.constant 1.000000e+00 : f32
      %20 = vector.broadcast %cst_13 : f32 to vector<8x128xf32>
      %21 = arith.addf %20, %19 : vector<8x128xf32>
      %22 = arith.divf %20, %21 : vector<8x128xf32>
      %23 = vector.extract_strided_slice %16 {offsets = [0, 128], sizes = [8, 128], strides = [1, 1]} : vector<8x384xf32> to vector<8x128xf32>
      %24 = math.tanh %23 : vector<8x128xf32>
      %25 = vector.extract_strided_slice %16 {offsets = [0, 256], sizes = [8, 128], strides = [1, 1]} : vector<8x384xf32> to vector<8x128xf32>
      %26 = arith.negf %25 : vector<8x128xf32>
      %27 = math.exp %26 : vector<8x128xf32>
      %cst_14 = arith.constant 1.000000e+00 : f32
      %28 = vector.broadcast %cst_14 : f32 to vector<8x128xf32>
      %29 = arith.addf %28, %27 : vector<8x128xf32>
      %30 = arith.divf %28, %29 : vector<8x128xf32>
      %31 = arith.mulf %22, %24 : vector<8x128xf32>
      %32 = math.tanh %31 : vector<8x128xf32>
      %33 = arith.mulf %30, %32 : vector<8x128xf32>
      %34 = arith.truncf %33 : vector<8x128xf32> to vector<8x128xbf16>
      %c0_15 = arith.constant 0 : index
      %c0_16 = arith.constant 0 : index
      %35 = vector.load %arg5[%c0_15, %c0_16] : memref<128x384xbf16, #tpu.memory_space<vmem>>, vector<128x384xbf16>
      %cst_17 = arith.constant dense<0.000000e+00> : vector<8x384xf32>
      %36 = tpu.matmul %34, %35, %cst_17 {dimension_numbers = #tpu.dot_dimension_numbers<[1], [0], [0], [1], [0, 0, 1, 1], [], []>} : vector<8x128xbf16>, vector<128x384xbf16>, vector<8x384xf32> -> vector<8x384xf32>
      %c0_18 = arith.constant 0 : index
      %c0_19 = arith.constant 0 : index
      %37 = vector.load %arg6[%c0_18, %c0_19] : memref<1x384xf32, #tpu.memory_space<vmem>>, vector<1x384xf32>
      %38 = vector.broadcast %37 : vector<1x384xf32> to vector<8x384xf32>
      %39 = arith.addf %36, %38 : vector<8x384xf32>
      %40 = vector.extract_strided_slice %39 {offsets = [0, 0], sizes = [8, 128], strides = [1, 1]} : vector<8x384xf32> to vector<8x128xf32>
      %41 = arith.negf %40 : vector<8x128xf32>
      %42 = math.exp %41 : vector<8x128xf32>
      %cst_20 = arith.constant 1.000000e+00 : f32
      %43 = vector.broadcast %cst_20 : f32 to vector<8x128xf32>
      %44 = arith.addf %43, %42 : vector<8x128xf32>
      %45 = arith.divf %43, %44 : vector<8x128xf32>
      %46 = vector.extract_strided_slice %39 {offsets = [0, 128], sizes = [8, 128], strides = [1, 1]} : vector<8x384xf32> to vector<8x128xf32>
      %47 = math.tanh %46 : vector<8x128xf32>
      %48 = vector.extract_strided_slice %39 {offsets = [0, 256], sizes = [8, 128], strides = [1, 1]} : vector<8x384xf32> to vector<8x128xf32>
      %49 = arith.negf %48 : vector<8x128xf32>
      %50 = math.exp %49 : vector<8x128xf32>
      %cst_21 = arith.constant 1.000000e+00 : f32
      %51 = vector.broadcast %cst_21 : f32 to vector<8x128xf32>
      %52 = arith.addf %51, %50 : vector<8x128xf32>
      %53 = arith.divf %51, %52 : vector<8x128xf32>
      %54 = arith.mulf %45, %47 : vector<8x128xf32>
      %55 = math.tanh %54 : vector<8x128xf32>
      %56 = arith.mulf %53, %55 : vector<8x128xf32>
      %57 = arith.truncf %56 : vector<8x128xf32> to vector<8x128xbf16>
      %c0_22 = arith.constant 0 : index
      %c0_23 = arith.constant 0 : index
      %58 = vector.load %arg7[%c0_22, %c0_23] : memref<128x128xbf16, #tpu.memory_space<vmem>>, vector<128x128xbf16>
      %cst_24 = arith.constant dense<0.000000e+00> : vector<8x128xf32>
      %59 = tpu.matmul %57, %58, %cst_24 {dimension_numbers = #tpu.dot_dimension_numbers<[1], [0], [0], [1], [0, 0, 1, 1], [], []>} : vector<8x128xbf16>, vector<128x128xbf16>, vector<8x128xf32> -> vector<8x128xf32>
      %c0_25 = arith.constant 0 : index
      %c0_26 = arith.constant 0 : index
      %60 = vector.load %arg8[%c0_25, %c0_26] : memref<1x128xf32, #tpu.memory_space<vmem>>, vector<1x128xf32>
      %61 = vector.broadcast %60 : vector<1x128xf32> to vector<8x128xf32>
      %62 = arith.addf %59, %61 : vector<8x128xf32>
      %c0_27 = arith.constant 0 : index
      %c0_28 = arith.constant 0 : index
      %63 = vector.load %arg9[%c0_27, %c0_28] : memref<8x128xf32, #tpu.memory_space<vmem>>, vector<8x128xf32>
      tpu.vector_store %arg9[%c0_27, %c0_28], %62 {strides = array<i32>} : memref<8x128xf32, #tpu.memory_space<vmem>>, vector<8x128xf32>,
    } else {
    }
    return
  }
  func.func @transform_0(%arg0: i32, %arg1: i32) -> (i32, i32) {
    %c0_i32 = arith.constant 0 : i32
    return %arg0, %arg1 : i32, i32
  }
  func.func @transform_1(%arg0: i32, %arg1: i32) -> (i32, i32) {
    %c0_i32 = arith.constant 0 : i32
    %c0_i32_0 = arith.constant 0 : i32
    return %arg1, %c0_i32 : i32, i32
  }
  func.func @transform_2(%arg0: i32, %arg1: i32) -> (i32, i32) {
    %c0_i32 = arith.constant 0 : i32
    %c0_i32_0 = arith.constant 0 : i32
    %c0_i32_1 = arith.constant 0 : i32
    return %c0_i32, %c0_i32_0 : i32, i32
  }
  func.func @transform_3(%arg0: i32, %arg1: i32) -> (i32, i32) {
    %c0_i32 = arith.constant 0 : i32
    %c0_i32_0 = arith.constant 0 : i32
    %c0_i32_1 = arith.constant 0 : i32
    return %c0_i32, %c0_i32_0 : i32, i32
  }
  func.func @transform_4(%arg0: i32, %arg1: i32) -> (i32, i32) {
    %c0_i32 = arith.constant 0 : i32
    %c0_i32_0 = arith.constant 0 : i32
    %c0_i32_1 = arith.constant 0 : i32
    return %c0_i32, %c0_i32_0 : i32, i32
  }
  func.func @transform_5(%arg0: i32, %arg1: i32) -> (i32, i32) {
    %c0_i32 = arith.constant 0 : i32
    %c0_i32_0 = arith.constant 0 : i32
    %c0_i32_1 = arith.constant 0 : i32
    return %c0_i32, %c0_i32_0 : i32, i32
  }
  func.func @transform_6(%arg0: i32, %arg1: i32) -> (i32, i32) {
    %c0_i32 = arith.constant 0 : i32
    %c0_i32_0 = arith.constant 0 : i32
    %c0_i32_1 = arith.constant 0 : i32
    return %c0_i32, %c0_i32_0 : i32, i32
  }
  func.func @transform_7(%arg0: i32, %arg1: i32) -> (i32, i32) {
    %c0_i32 = arith.constant 0 : i32
    %c0_i32_0 = arith.constant 0 : i32
    return %arg0, %c0_i32 : i32, i32
  }
}

</mosaic_0001>

<llo_original>
// kernel: tpu_custom_call.1
$region0: #{tpu_custom_call.1}
  #allocation0 [shape = 'u32[]', space=smem, size = 0x4, offset = 0x4, fixed_abs, tag = 'smem constant byte address 0x4 - core index']
  #allocation1 [shape = 'u32[144,128]{1,0:T(1,128)}', space=vmem, size = 0x12000, scoped, tag = 'internal scratch']
  #allocation2 [shape = 'f32[8,384]{1,0:T(8,128)}', space=vmem, size = 0x3000, scoped, tag = 'scratch operand']
  %s0 = inlined_call_operand.hbm [shape: f32[8,4096], index: 0, kind: input, shape index: {}]
  %s1 = inlined_call_operand.hbm [shape: bf16[4096,384], index: 1, kind: input, shape index: {}]
  %s2 = inlined_call_operand.hbm [shape: f32[1,384], index: 2, kind: input, shape index: {}]
  %s3 = inlined_call_operand.hbm [shape: bf16[128,384], index: 3, kind: input, shape index: {}]
  %s4 = inlined_call_operand.hbm [shape: f32[1,384], index: 4, kind: input, shape index: {}]
  %s5 = inlined_call_operand.hbm [shape: bf16[128,128], index: 5, kind: input, shape index: {}]
  %s6 = inlined_call_operand.hbm [shape: f32[1,128], index: 6, kind: input, shape index: {}]
  %s7 = inlined_call_operand.hbm [shape: f32[8,128], index: 7, kind: output, shape index: {}]
  %s8 = sld [smem:[#allocation0]]
  $region97: #{tpu_custom_call.1} parent=0
    _
  %s10 = ssub.s32 1, %s8
  %s11 = scalar_select 0, %s10, %s8
  $region1: #{tpu_custom_call.1} parent=0
    #allocation3 [shape = 'u8[65536]{0}', space=vmem, size = 0x10000, scoped, tag = 'input window, operand 0']
    #allocation4 [shape = 's32[2]{0}', space=sflag, size = 0x8, scoped, tag = 'scoped memory for tpu_custom_call.1']
    #allocation5 [shape = 's32[2]{0}', space=sflag, size = 0x8, scoped, tag = 'scoped memory for tpu_custom_call.1']
    #allocation6 [shape = 'u8[1572864]{0}', space=vmem, size = 0x180000, scoped, tag = 'input window, operand 1']
    #allocation7 [shape = 's32[2]{0}', space=sflag, size = 0x8, scoped, tag = 'scoped memory for tpu_custom_call.1']
    #allocation8 [shape = 'u8[1536]{0}', space=vmem, size = 0x800, scoped, tag = 'input window, operand 2, single buffered']
    #allocation9 [shape = 'u8[98304]{0}', space=vmem, size = 0x18000, scoped, tag = 'input window, operand 3, single buffered']
    #allocation10 [shape = 's32[1]{0}', space=sflag, size = 0x4, scoped, tag = 'scoped memory for tpu_custom_call.1']
    #allocation11 [shape = 'u8[1536]{0}', space=vmem, size = 0x800, scoped, tag = 'input window, operand 4, single buffered']
    #allocation12 [shape = 'u8[32768]{0}', space=vmem, size = 0x8000, scoped, tag = 'input window, operand 5, single buffered']
    #allocation13 [shape = 's32[1]{0}', space=sflag, size = 0x4, scoped, tag = 'scoped memory for tpu_custom_call.1']
    #allocation14 [shape = 'u8[512]{0}', space=vmem, size = 0x400, scoped, tag = 'input window, operand 6, single buffered']
    #allocation15 [shape = 'u8[4096]{0}', space=vmem, size = 0x1000, scoped, tag = 'output window, operand 0, single buffered']
    %12 = vsyncpa [#allocation4], 0
    %s13 = scalar_lea.sflag [#allocation4], 1
    %14 = vsyncpa %s13, 0
    %15 = vsyncpa [#allocation7], 0
    %s16 = scalar_lea.sflag [#allocation7], 1
    %17 = vsyncpa %s16, 0
    %18 = vsyncpa [#allocation10], 0
    %19 = vsyncpa [#allocation13], 0
    %20 = vsyncpa [#allocation5], 0
    loop: start=0, step=1, limit=6
    $region2: #{tpu_custom_call.1} parent=1 // loop_pre_header
      _
    $region3: #{tpu_custom_call.1} parent=1 // loop_header
      %s22 = sphi 0, %s26
      %p23 = scmp.ge.s32.totalorder %s22, 6
      %s29 = sphi 0, %s41
      %s30 = sphi 0, %s37
      %s31 = sphi 0, %s29
      %s32 = sphi 0, %s30
      %s33 = sphi 0, %s31
      %s34 = sphi 0, %s32
      %s46 = sphi 0, %s48
      %s49 = sphi 0, %s46
      %s50 = sphi 0, %s49
      %s66 = sphi 0, %s50
      %s72 = sphi 0, %s74
      %s75 = sphi 0, %s72
      %s76 = sphi 0, %s75
      %s92 = sphi 0, %s76
      %s96 = sphi 0, %s96
      %s98 = sphi 0, %s96
      %s99 = sphi 0, %s98
      %s113 = sphi 0, %s99
      %s117 = sphi 0, %s117
      %s119 = sphi 0, %s117
      %s120 = sphi 0, %s119
      %s134 = sphi 0, %s120
      %s138 = sphi 0, %s138
      %s140 = sphi 0, %s138
      %s141 = sphi 0, %s140
      %s155 = sphi 0, %s141
      %s159 = sphi 0, %s159
      %s161 = sphi 0, %s159
      %s162 = sphi 0, %s161
      %s176 = sphi 0, %s162
      %s180 = sphi 0, %s180
      %s182 = sphi 0, %s180
      %s183 = sphi 0, %s182
      %s197 = sphi 0, %s183
      %s203 = sphi 0, %s205
      %s206 = sphi 0, %s203
      %s207 = sphi 0, %s206
      %s223 = sphi 0, %s207
    $region4: #{tpu_custom_call.1} parent=1 // loop_header_branch
      %25 = sbr.rel (%p23) target = $region8
    $region5: #{tpu_custom_call.1} parent=1 // loop_body
      %s27 = ssub.s32 %s22, 1
      %s28 = ssub.s32 %s22, 2
      %s35 = sadd.s32 1, %s30
      %p36 = scmp.ge.s32.totalorder %s35, 4
      %s37 = scalar_select %p36, 0, %s35
      %s38 = sadd.s32 1, %s29
      %s39 = scalar_select %p36, %s38, %s29
      %p40 = scmp.ge.s32.totalorder %s39, 1
      %s41 = scalar_select %p40, 0, %s39
      %s42 = ssub.s32 %s29, %s41
      %s43 = ssub.s32 %s30, %s37
      %s44 = sor.u32 %s42, %s43
      %p45 = scmp.eq.s32.totalorder %s44, 0
      %s47 = sadd.s32 %s46, 1
      %s48 = scalar_select %p45, %s46, %s47
      %p51 = pneg %p45
      %p52 = scmp.eq.s32.totalorder %s22, 3
      %p53 = por %p51, %p52
      %p54 = scmp.ne.s32.totalorder %s46, %s49
      %p55 = scmp.eq.s32.totalorder %s22, 0
      %p56 = por %p54, %p55
      %p57 = scmp.ne.s32.totalorder %s46, %s49
      %p58 = scmp.eq.s32.totalorder %s27, 3
      %p59 = por %p57, %p58
      %p60 = scmp.ne.s32.totalorder %s49, %s50
      %p61 = scmp.eq.s32.totalorder %s27, 0
      %p62 = por %p60, %p61
      %p63 = scmp.ne.s32.totalorder %s49, %s50
      %p64 = scmp.eq.s32.totalorder %s28, 3
      %p65 = por %p63, %p64
      %p67 = scmp.ne.s32.totalorder %s50, %s66
      %p68 = scmp.eq.s32.totalorder %s28, 0
      %p69 = por %p67, %p68
      %s70 = ssub.s32 %s30, %s37
      %p71 = scmp.eq.s32.totalorder %s70, 0
      %s73 = sadd.s32 %s72, 1
      %s74 = scalar_select %p71, %s72, %s73
      %p77 = pneg %p71
      %p78 = scmp.eq.s32.totalorder %s22, 3
      %p79 = por %p77, %p78
      %p80 = scmp.ne.s32.totalorder %s72, %s75
      %p81 = scmp.eq.s32.totalorder %s22, 0
      %p82 = por %p80, %p81
      %p83 = scmp.ne.s32.totalorder %s72, %s75
      %p84 = scmp.eq.s32.totalorder %s27, 3
      %p85 = por %p83, %p84
      %p86 = scmp.ne.s32.totalorder %s75, %s76
      %p87 = scmp.eq.s32.totalorder %s27, 0
      %p88 = por %p86, %p87
      %p89 = scmp.ne.s32.totalorder %s75, %s76
      %p90 = scmp.eq.s32.totalorder %s28, 3
      %p91 = por %p89, %p90
      %p93 = scmp.ne.s32.totalorder %s76, %s92
      %p94 = scmp.eq.s32.totalorder %s28, 0
      %p95 = por %p93, %p94
      %s97 = sadd.s32 %s96, 1
      %p100 = scmp.eq.s32.totalorder %s22, 3
      %p101 = scmp.ne.s32.totalorder %s96, %s98
      %p102 = scmp.eq.s32.totalorder %s22, 0
      %p103 = por %p101, %p102
      %p104 = scmp.ne.s32.totalorder %s96, %s98
      %p105 = scmp.eq.s32.totalorder %s27, 3
      %p106 = por %p104, %p105
      %p107 = scmp.ne.s32.totalorder %s98, %s99
      %p108 = scmp.eq.s32.totalorder %s27, 0
      %p109 = por %p107, %p108
      %p110 = scmp.ne.s32.totalorder %s98, %s99
      %p111 = scmp.eq.s32.totalorder %s28, 3
      %p112 = por %p110, %p111
      %p114 = scmp.ne.s32.totalorder %s99, %s113
      %p115 = scmp.eq.s32.totalorder %s28, 0
      %p116 = por %p114, %p115
      %s118 = sadd.s32 %s117, 1
      %p121 = scmp.eq.s32.totalorder %s22, 3
      %p122 = scmp.ne.s32.totalorder %s117, %s119
      %p123 = scmp.eq.s32.totalorder %s22, 0
      %p124 = por %p122, %p123
      %p125 = scmp.ne.s32.totalorder %s117, %s119
      %p126 = scmp.eq.s32.totalorder %s27, 3
      %p127 = por %p125, %p126
      %p128 = scmp.ne.s32.totalorder %s119, %s120
      %p129 = scmp.eq.s32.totalorder %s27, 0
      %p130 = por %p128, %p129
      %p131 = scmp.ne.s32.totalorder %s119, %s120
      %p132 = scmp.eq.s32.totalorder %s28, 3
      %p133 = por %p131, %p132
      %p135 = scmp.ne.s32.totalorder %s120, %s134
      %p136 = scmp.eq.s32.totalorder %s28, 0
      %p137 = por %p135, %p136
      %s139 = sadd.s32 %s138, 1
      %p142 = scmp.eq.s32.totalorder %s22, 3
      %p143 = scmp.ne.s32.totalorder %s138, %s140
      %p144 = scmp.eq.s32.totalorder %s22, 0
      %p145 = por %p143, %p144
      %p146 = scmp.ne.s32.totalorder %s138, %s140
      %p147 = scmp.eq.s32.totalorder %s27, 3
      %p148 = por %p146, %p147
      %p149 = scmp.ne.s32.totalorder %s140, %s141
      %p150 = scmp.eq.s32.totalorder %s27, 0
      %p151 = por %p149, %p150
      %p152 = scmp.ne.s32.totalorder %s140, %s141
      %p153 = scmp.eq.s32.totalorder %s28, 3
      %p154 = por %p152, %p153
      %p156 = scmp.ne.s32.totalorder %s141, %s155
      %p157 = scmp.eq.s32.totalorder %s28, 0
      %p158 = por %p156, %p157
      %s160 = sadd.s32 %s159, 1
      %p163 = scmp.eq.s32.totalorder %s22, 3
      %p164 = scmp.ne.s32.totalorder %s159, %s161
      %p165 = scmp.eq.s32.totalorder %s22, 0
      %p166 = por %p164, %p165
      %p167 = scmp.ne.s32.totalorder %s159, %s161
      %p168 = scmp.eq.s32.totalorder %s27, 3
      %p169 = por %p167, %p168
      %p170 = scmp.ne.s32.totalorder %s161, %s162
      %p171 = scmp.eq.s32.totalorder %s27, 0
      %p172 = por %p170, %p171
      %p173 = scmp.ne.s32.totalorder %s161, %s162
      %p174 = scmp.eq.s32.totalorder %s28, 3
      %p175 = por %p173, %p174
      %p177 = scmp.ne.s32.totalorder %s162, %s176
      %p178 = scmp.eq.s32.totalorder %s28, 0
      %p179 = por %p177, %p178
      %s181 = sadd.s32 %s180, 1
      %p184 = scmp.eq.s32.totalorder %s22, 3
      %p185 = scmp.ne.s32.totalorder %s180, %s182
      %p186 = scmp.eq.s32.totalorder %s22, 0
      %p187 = por %p185, %p186
      %p188 = scmp.ne.s32.totalorder %s180, %s182
      %p189 = scmp.eq.s32.totalorder %s27, 3
      %p190 = por %p188, %p189
      %p191 = scmp.ne.s32.totalorder %s182, %s183
      %p192 = scmp.eq.s32.totalorder %s27, 0
      %p193 = por %p191, %p192
      %p194 = scmp.ne.s32.totalorder %s182, %s183
      %p195 = scmp.eq.s32.totalorder %s28, 3
      %p196 = por %p194, %p195
      %p198 = scmp.ne.s32.totalorder %s183, %s197
      %p199 = scmp.eq.s32.totalorder %s28, 0
      %p200 = por %p198, %p199
      %s201 = ssub.s32 %s29, %s41
      %p202 = scmp.eq.s32.totalorder %s201, 0
      %s204 = sadd.s32 %s203, 1
      %s205 = scalar_select %p202, %s203, %s204
      %p208 = pneg %p202
      %p209 = scmp.eq.s32.totalorder %s22, 3
      %p210 = por %p208, %p209
      %p211 = scmp.ne.s32.totalorder %s203, %s206
      %p212 = scmp.eq.s32.totalorder %s22, 0
      %p213 = por %p211, %p212
      %p214 = scmp.ne.s32.totalorder %s203, %s206
      %p215 = scmp.eq.s32.totalorder %s27, 3
      %p216 = por %p214, %p215
      %p217 = scmp.ne.s32.totalorder %s206, %s207
      %p218 = scmp.eq.s32.totalorder %s27, 0
      %p219 = por %p217, %p218
      %p220 = scmp.ne.s32.totalorder %s206, %s207
      %p221 = scmp.eq.s32.totalorder %s28, 3
      %p222 = por %p220, %p221
      %p224 = scmp.ne.s32.totalorder %s207, %s223
      %p225 = scmp.eq.s32.totalorder %s28, 0
      %p226 = por %p224, %p225
      %p227 = scmp.le.s32.totalorder 1, %s22
      %p228 = scmp.lt.s32.totalorder %s22, 5
      %p229 = pnand %p227, %p228
      %p230 = pneg %p229
      // Predicated region
      $region9: #{tpu_custom_call.1} parent=5 // pred_check
        _
      $region10: #{tpu_custom_call.1} parent=5 // pred_check_branch
        %232 = sbr.rel (%p229) target = $region12
      $region11: #{tpu_custom_call.1} parent=5 // pred_region
        %s233 = ssub.s32 %s22, 1
        // Predicated region
        $region13: #{tpu_custom_call.1} parent=11 // pred_check
          %p234 = pneg %p109
        $region14: #{tpu_custom_call.1} parent=11 // pred_check_branch
          %236 = sbr.rel (%p234) target = $region16
        $region15: #{tpu_custom_call.1} parent=11 // pred_region
          %s238 = ssub.s32 48, 48
          %239 = vsyncadd [#allocation7], %s238
          %s241 = sshll.u32 [#allocation8], 4
          %s242 = int_to_ptr.vmem [resolvable:$true] %s241
          %244 = dma.hbm_to_vmem [thread:$0]  %s2, 48, %s242, [#allocation7]
        $region16: #{tpu_custom_call.1} parent=11 // pred_fallthru
          _
        // Predicated region
        $region17: #{tpu_custom_call.1} parent=11 // pred_check
          %p245 = pneg %p130
        $region18: #{tpu_custom_call.1} parent=11 // pred_check_branch
          %247 = sbr.rel (%p245) target = $region20
        $region19: #{tpu_custom_call.1} parent=11 // pred_region
          %s249 = ssub.s32 3072, 3072
          %250 = vsyncadd [#allocation10], %s249
          %s251 = sshll.u32 [#allocation9], 4
          %s252 = int_to_ptr.vmem [resolvable:$true] %s251
          %257 = dma.hbm_to_vmem [thread:$0]  %s3, 3072, %s252, [#allocation10], 192, 192, 12
        $region20: #{tpu_custom_call.1} parent=11 // pred_fallthru
          _
        // Predicated region
        $region21: #{tpu_custom_call.1} parent=11 // pred_check
          %p258 = pneg %p151
        $region22: #{tpu_custom_call.1} parent=11 // pred_check_branch
          %260 = sbr.rel (%p258) target = $region24
        $region23: #{tpu_custom_call.1} parent=11 // pred_region
          %s262 = ssub.s32 48, 48
          %263 = vsyncadd [#allocation10], %s262
          %s265 = sshll.u32 [#allocation11], 4
          %s266 = int_to_ptr.vmem [resolvable:$true] %s265
          %268 = dma.hbm_to_vmem [thread:$0]  %s4, 48, %s266, [#allocation10]
        $region24: #{tpu_custom_call.1} parent=11 // pred_fallthru
          _
        // Predicated region
        $region25: #{tpu_custom_call.1} parent=11 // pred_check
          %p269 = pneg %p172
        $region26: #{tpu_custom_call.1} parent=11 // pred_check_branch
          %271 = sbr.rel (%p269) target = $region28
        $region27: #{tpu_custom_call.1} parent=11 // pred_region
          %s273 = ssub.s32 1024, 1024
          %274 = vsyncadd [#allocation13], %s273
          %s275 = sshll.u32 [#allocation12], 4
          %s276 = int_to_ptr.vmem [resolvable:$true] %s275
          %281 = dma.hbm_to_vmem [thread:$0]  %s5, 1024, %s276, [#allocation13], 64, 64, 4
        $region28: #{tpu_custom_call.1} parent=11 // pred_fallthru
          _
        // Predicated region
        $region29: #{tpu_custom_call.1} parent=11 // pred_check
          %p282 = pneg %p193
        $region30: #{tpu_custom_call.1} parent=11 // pred_check_branch
          %284 = sbr.rel (%p282) target = $region32
        $region31: #{tpu_custom_call.1} parent=11 // pred_region
          %s286 = ssub.s32 16, 16
          %287 = vsyncadd [#allocation13], %s286
          %s289 = sshll.u32 [#allocation14], 4
          %s290 = int_to_ptr.vmem [resolvable:$true] %s289
          %292 = dma.hbm_to_vmem [thread:$0]  %s6, 16, %s290, [#allocation13]
        $region32: #{tpu_custom_call.1} parent=11 // pred_fallthru
          _
      $region12: #{tpu_custom_call.1} parent=5 // pred_fallthru
        _
      %p293 = scmp.lt.s32.totalorder %s22, 4
      // Predicated region
      $region33: #{tpu_custom_call.1} parent=5 // pred_check
        %p294 = pneg %p293
      $region34: #{tpu_custom_call.1} parent=5 // pred_check_branch
        %296 = sbr.rel (%p294) target = $region36
      $region35: #{tpu_custom_call.1} parent=5 // pred_region
        // Predicated region
        $region37: #{tpu_custom_call.1} parent=35 // pred_check
          %p297 = pneg %p56
        $region38: #{tpu_custom_call.1} parent=35 // pred_check_branch
          %299 = sbr.rel (%p297) target = $region40
        $region39: #{tpu_custom_call.1} parent=35 // pred_region
          %s300 = sand.u32 %s46, 1
          %s301 = scalar_lea.sflag [#allocation4], %s300
          %s302 = sand.u32 %s46, 1
          %s303 = smul.addr %s302, 64
          %s304 = scalar_lea.vmem [#allocation3], %s303
          %s305 = smul.u32 8, %s30
          %s307 = ssub.s32 1024, 1024
          %308 = vsyncadd %s301, %s307
          %s309 = smul.addr %s29, 32
          %s310 = sadd.s32 %s305, %s309
          %s311 = smul.addr %s310, 128
          %s312 = scalar_lea.hbm %s0, %s311
          %s314 = sshll.u32 %s304, 4
          %s315 = int_to_ptr.vmem [resolvable:$true] %s314
          %317 = dma.hbm_to_vmem [thread:$0]  %s312, 1024, %s315, %s301
        $region40: #{tpu_custom_call.1} parent=35 // pred_fallthru
          _
        // Predicated region
        $region41: #{tpu_custom_call.1} parent=35 // pred_check
          %p318 = pneg %p82
        $region42: #{tpu_custom_call.1} parent=35 // pred_check_branch
          %320 = sbr.rel (%p318) target = $region44
        $region43: #{tpu_custom_call.1} parent=35 // pred_region
          %s321 = sand.u32 %s22, 1
          %s322 = scalar_lea.sflag [#allocation7], %s321
          %s323 = sand.u32 %s72, 1
          %s324 = smul.addr %s323, 1536
          %s325 = scalar_lea.vmem [#allocation6], %s324
          %s326 = smul.u32 128, %s30
          %s328 = ssub.s32 24576, 24576
          %329 = vsyncadd %s322, %s328
          %s330 = smul.addr %s326, 3
          %s331 = smul.addr %s330, 64
          %s332 = scalar_lea.hbm %s1, %s331
          %s333 = sshll.u32 %s325, 4
          %s334 = int_to_ptr.vmem [resolvable:$true] %s333
          %339 = dma.hbm_to_vmem [thread:$0]  %s332, 24576, %s334, %s322, 192, 192, 12
        $region44: #{tpu_custom_call.1} parent=35 // pred_fallthru
          _
      $region36: #{tpu_custom_call.1} parent=5 // pred_fallthru
        _
      %p340 = scmp.le.s32.totalorder 1, %s22
      %p341 = scmp.lt.s32.totalorder %s22, 5
      %p342 = pnand %p340, %p341
      %p343 = pneg %p342
      // Predicated region
      $region45: #{tpu_custom_call.1} parent=5 // pred_check
        _
      $region46: #{tpu_custom_call.1} parent=5 // pred_check_branch
        %345 = sbr.rel (%p342) target = $region48
      $region47: #{tpu_custom_call.1} parent=5 // pred_region
        %s346 = ssub.s32 %s22, 1
        %s347 = sand.u32 %s49, 1
        %s348 = scalar_lea.sflag [#allocation4], %s347
        %s349 = sand.u32 %s49, 1
        %s350 = smul.addr %s349, 64
        %s351 = scalar_lea.vmem [#allocation3], %s350
        // Predicated region
        $region49: #{tpu_custom_call.1} parent=47 // pred_check
          %p352 = pneg %p62
        $region50: #{tpu_custom_call.1} parent=47 // pred_check_branch
          %354 = sbr.rel (%p352) target = $region52
        $region51: #{tpu_custom_call.1} parent=47 // pred_region
          %355 = dma.done %s348, 1024
        $region52: #{tpu_custom_call.1} parent=47 // pred_fallthru
          _
        %s356 = sand.u32 %s27, 1
        %s357 = scalar_lea.sflag [#allocation7], %s356
        %s358 = sand.u32 %s75, 1
        %s359 = smul.addr %s358, 1536
        %s360 = scalar_lea.vmem [#allocation6], %s359
        // Predicated region
        $region53: #{tpu_custom_call.1} parent=47 // pred_check
          %p361 = pneg %p88
        $region54: #{tpu_custom_call.1} parent=47 // pred_check_branch
          %363 = sbr.rel (%p361) target = $region56
        $region55: #{tpu_custom_call.1} parent=47 // pred_region
          %364 = dma.done %s357, 24576
        $region56: #{tpu_custom_call.1} parent=47 // pred_fallthru
          _
        // Predicated region
        $region57: #{tpu_custom_call.1} parent=47 // pred_check
          %p365 = pneg %p109
        $region58: #{tpu_custom_call.1} parent=47 // pred_check_branch
          %367 = sbr.rel (%p365) target = $region60
        $region59: #{tpu_custom_call.1} parent=47 // pred_region
          %368 = dma.done [#allocation7], 48
        $region60: #{tpu_custom_call.1} parent=47 // pred_fallthru
          _
        // Predicated region
        $region61: #{tpu_custom_call.1} parent=47 // pred_check
          %p369 = pneg %p130
        $region62: #{tpu_custom_call.1} parent=47 // pred_check_branch
          %371 = sbr.rel (%p369) target = $region64
        $region63: #{tpu_custom_call.1} parent=47 // pred_region
          %372 = dma.done [#allocation10], 3072
        $region64: #{tpu_custom_call.1} parent=47 // pred_fallthru
          _
        // Predicated region
        $region65: #{tpu_custom_call.1} parent=47 // pred_check
          %p373 = pneg %p151
        $region66: #{tpu_custom_call.1} parent=47 // pred_check_branch
          %375 = sbr.rel (%p373) target = $region68
        $region67: #{tpu_custom_call.1} parent=47 // pred_region
          %376 = dma.done [#allocation10], 48
        $region68: #{tpu_custom_call.1} parent=47 // pred_fallthru
          _
        // Predicated region
        $region69: #{tpu_custom_call.1} parent=47 // pred_check
          %p377 = pneg %p172
        $region70: #{tpu_custom_call.1} parent=47 // pred_check_branch
          %379 = sbr.rel (%p377) target = $region72
        $region71: #{tpu_custom_call.1} parent=47 // pred_region
          %380 = dma.done [#allocation13], 1024
        $region72: #{tpu_custom_call.1} parent=47 // pred_fallthru
          _
        // Predicated region
        $region73: #{tpu_custom_call.1} parent=47 // pred_check
          %p381 = pneg %p193
        $region74: #{tpu_custom_call.1} parent=47 // pred_check_branch
          %383 = sbr.rel (%p381) target = $region76
        $region75: #{tpu_custom_call.1} parent=47 // pred_region
          %384 = dma.done [#allocation13], 16
        $region76: #{tpu_custom_call.1} parent=47 // pred_fallthru
          _
        %s385 = sand.u32 %s49, 1
        %s386 = scalar_lea.sflag [#allocation4], %s385
        %s387 = sand.u32 %s49, 1
        %s388 = smul.addr %s387, 64
        %s389 = scalar_lea.vmem [#allocation3], %s388
        %p390 = pneg %p62
        %p391 = pneg %p59
        %s392 = sand.u32 %s27, 1
        %s393 = scalar_lea.sflag [#allocation7], %s392
        %s394 = sand.u32 %s75, 1
        %s395 = smul.addr %s394, 1536
        %s396 = scalar_lea.vmem [#allocation6], %s395
        %p397 = pneg %p88
        %p398 = pneg %p85
        %p399 = pneg %p109
        %p400 = pneg %p106
        %p401 = pneg %p130
        %p402 = pneg %p127
        %p403 = pneg %p151
        %p404 = pneg %p148
        %p405 = pneg %p172
        %p406 = pneg %p169
        %p407 = pneg %p193
        %p408 = pneg %p190
        %p409 = pneg %p219
        %p410 = pneg %p216
        %s411 = smul.u32 8, %s32
        %s412 = smul.u32 128, %s32
        %p414 = scmp.eq.s32.totalorder %s32, 0
        // Predicated region
        $region77: #{tpu_custom_call.1} parent=47 // pred_check
          %p415 = pneg %p414
        $region78: #{tpu_custom_call.1} parent=47 // pred_check_branch
          %417 = sbr.rel (%p415) target = $region80
        $region79: #{tpu_custom_call.1} parent=47 // pred_region
          %418 = vst [vmem:[#allocation2] sm:$0xff] 0.0
          %419 = vst [vmem:[#allocation2 + $0x8] sm:$0xff] 0.0
          %420 = vst [vmem:[#allocation2 + $0x10] sm:$0xff] 0.0
        $region80: #{tpu_custom_call.1} parent=47 // pred_fallthru
          _
        %v421 = vld [vmem:[%s351] sm:$0xff]
        %v422 = vld [vmem:[%s351 + $0x8] sm:$0xff]
        %v423 = vld [vmem:[%s351 + $0x10] sm:$0xff]
        %v424 = vld [vmem:[%s351 + $0x18] sm:$0xff]
        %v425 = vld [vmem:[%s351 + $0x20] sm:$0xff]
        %v426 = vld [vmem:[%s351 + $0x28] sm:$0xff]
        %v427 = vld [vmem:[%s351 + $0x30] sm:$0xff]
        %v428 = vld [vmem:[%s351 + $0x38] sm:$0xff]
        %v429 = vpack.c.bf16 %v421, %v421
        %v430 = vpack.c.bf16 %v422, %v422
        %v431 = vpack.c.bf16 %v423, %v423
        %v432 = vpack.c.bf16 %v424, %v424
        %v433 = vpack.c.bf16 %v425, %v425
        %v434 = vpack.c.bf16 %v426, %v426
        %v435 = vpack.c.bf16 %v427, %v427
        %v436 = vpack.c.bf16 %v428, %v428
        %v437 = vld [vmem:[#allocation2] sm:$0xff]
        %v438 = vld [vmem:[#allocation2 + $0x8] sm:$0xff]
        %v439 = vld [vmem:[#allocation2 + $0x10] sm:$0xff]
        %v440 = vld [vmem:[%s360] sm:$0xff]
        %v441 = vld [vmem:[%s360 + $0x8] sm:$0xf]
        %v442 = vld [vmem:[%s360 + $0xc] sm:$0xff]
        %v443 = vld [vmem:[%s360 + $0x14] sm:$0xf]
        %v444 = vld [vmem:[%s360 + $0x18] sm:$0xff]
        %v445 = vld [vmem:[%s360 + $0x20] sm:$0xf]
        %v446 = vld [vmem:[%s360 + $0x24] sm:$0xff]
        %v447 = vld [vmem:[%s360 + $0x2c] sm:$0xf]
        %v448 = vld [vmem:[%s360 + $0x30] sm:$0xff]
        %v449 = vld [vmem:[%s360 + $0x38] sm:$0xf]
        %v450 = vld [vmem:[%s360 + $0x3c] sm:$0xff]
        %v451 = vld [vmem:[%s360 + $0x44] sm:$0xf]
        %v452 = vld [vmem:[%s360 + $0x48] sm:$0xff]
        %v453 = vld [vmem:[%s360 + $0x50] sm:$0xf]
        %v454 = vld [vmem:[%s360 + $0x54] sm:$0xff]
        %v455 = vld [vmem:[%s360 + $0x5c] sm:$0xf]
        %v456 = vld [vmem:[%s360 + $0x60] sm:$0xff]
        %v457 = vld [vmem:[%s360 + $0x68] sm:$0xf]
        %v458 = vld [vmem:[%s360 + $0x6c] sm:$0xff]
        %v459 = vld [vmem:[%s360 + $0x74] sm:$0xf]
        %v460 = vld [vmem:[%s360 + $0x78] sm:$0xff]
        %v461 = vld [vmem:[%s360 + $0x80] sm:$0xf]
        %v462 = vld [vmem:[%s360 + $0x84] sm:$0xff]
        %v463 = vld [vmem:[%s360 + $0x8c] sm:$0xf]
        %v464 = vld [vmem:[%s360 + $0x90] sm:$0xff]
        %v465 = vld [vmem:[%s360 + $0x98] sm:$0xf]
        %v466 = vld [vmem:[%s360 + $0x9c] sm:$0xff]
        %v467 = vld [vmem:[%s360 + $0xa4] sm:$0xf]
        %v468 = vld [vmem:[%s360 + $0xa8] sm:$0xff]
        %v469 = vld [vmem:[%s360 + $0xb0] sm:$0xf]
        %v470 = vld [vmem:[%s360 + $0xb4] sm:$0xff]
        %v471 = vld [vmem:[%s360 + $0xbc] sm:$0xf]
        %v472 = vld [vmem:[%s360 + $0xc0] sm:$0xff]
        %v473 = vld [vmem:[%s360 + $0xc8] sm:$0xf]
        %v474 = vld [vmem:[%s360 + $0xcc] sm:$0xff]
        %v475 = vld [vmem:[%s360 + $0xd4] sm:$0xf]
        %v476 = vld [vmem:[%s360 + $0xd8] sm:$0xff]
        %v477 = vld [vmem:[%s360 + $0xe0] sm:$0xf]
        %v478 = vld [vmem:[%s360 + $0xe4] sm:$0xff]
        %v479 = vld [vmem:[%s360 + $0xec] sm:$0xf]
        %v480 = vld [vmem:[%s360 + $0xf0] sm:$0xff]
        %v481 = vld [vmem:[%s360 + $0xf8] sm:$0xf]
        %v482 = vld [vmem:[%s360 + $0xfc] sm:$0xff]
        %v483 = vld [vmem:[%s360 + $0x104] sm:$0xf]
        %v484 = vld [vmem:[%s360 + $0x108] sm:$0xff]
        %v485 = vld [vmem:[%s360 + $0x110] sm:$0xf]
        %v486 = vld [vmem:[%s360 + $0x114] sm:$0xff]
        %v487 = vld [vmem:[%s360 + $0x11c] sm:$0xf]
        %v488 = vld [vmem:[%s360 + $0x120] sm:$0xff]
        %v489 = vld [vmem:[%s360 + $0x128] sm:$0xf]
        %v490 = vld [vmem:[%s360 + $0x12c] sm:$0xff]
        %v491 = vld [vmem:[%s360 + $0x134] sm:$0xf]
        %v492 = vld [vmem:[%s360 + $0x138] sm:$0xff]
        %v493 = vld [vmem:[%s360 + $0x140] sm:$0xf]
        %v494 = vld [vmem:[%s360 + $0x144] sm:$0xff]
        %v495 = vld [vmem:[%s360 + $0x14c] sm:$0xf]
        %v496 = vld [vmem:[%s360 + $0x150] sm:$0xff]
        %v497 = vld [vmem:[%s360 + $0x158] sm:$0xf]
        %v498 = vld [vmem:[%s360 + $0x15c] sm:$0xff]
        %v499 = vld [vmem:[%s360 + $0x164] sm:$0xf]
        %v500 = vld [vmem:[%s360 + $0x168] sm:$0xff]
        %v501 = vld [vmem:[%s360 + $0x170] sm:$0xf]
        %v502 = vld [vmem:[%s360 + $0x174] sm:$0xff]
        %v503 = vld [vmem:[%s360 + $0x17c] sm:$0xf]
        %v504 = vld [vmem:[%s360 + $0x180] sm:$0xff]
        %v505 = vld [vmem:[%s360 + $0x188] sm:$0xf]
        %v506 = vld [vmem:[%s360 + $0x18c] sm:$0xff]
        %v507 = vld [vmem:[%s360 + $0x194] sm:$0xf]
        %v508 = vld [vmem:[%s360 + $0x198] sm:$0xff]
        %v509 = vld [vmem:[%s360 + $0x1a0] sm:$0xf]
        %v510 = vld [vmem:[%s360 + $0x1a4] sm:$0xff]
        %v511 = vld [vmem:[%s360 + $0x1ac] sm:$0xf]
        %v512 = vld [vmem:[%s360 + $0x1b0] sm:$0xff]
        %v513 = vld [vmem:[%s360 + $0x1b8] sm:$0xf]
        %v514 = vld [vmem:[%s360 + $0x1bc] sm:$0xff]
        %v515 = vld [vmem:[%s360 + $0x1c4] sm:$0xf]
        %v516 = vld [vmem:[%s360 + $0x1c8] sm:$0xff]
        %v517 = vld [vmem:[%s360 + $0x1d0] sm:$0xf]
        %v518 = vld [vmem:[%s360 + $0x1d4] sm:$0xff]
        %v519 = vld [vmem:[%s360 + $0x1dc] sm:$0xf]
        %v520 = vld [vmem:[%s360 + $0x1e0] sm:$0xff]
        %v521 = vld [vmem:[%s360 + $0x1e8] sm:$0xf]
        %v522 = vld [vmem:[%s360 + $0x1ec] sm:$0xff]
        %v523 = vld [vmem:[%s360 + $0x1f4] sm:$0xf]
        %v524 = vld [vmem:[%s360 + $0x1f8] sm:$0xff]
        %v525 = vld [vmem:[%s360 + $0x200] sm:$0xf]
        %v526 = vld [vmem:[%s360 + $0x204] sm:$0xff]
        %v527 = vld [vmem:[%s360 + $0x20c] sm:$0xf]
        %v528 = vld [vmem:[%s360 + $0x210] sm:$0xff]
        %v529 = vld [vmem:[%s360 + $0x218] sm:$0xf]
        %v530 = vld [vmem:[%s360 + $0x21c] sm:$0xff]
        %v531 = vld [vmem:[%s360 + $0x224] sm:$0xf]
        %v532 = vld [vmem:[%s360 + $0x228] sm:$0xff]
        %v533 = vld [vmem:[%s360 + $0x230] sm:$0xf]
        %v534 = vld [vmem:[%s360 + $0x234] sm:$0xff]
        %v535 = vld [vmem:[%s360 + $0x23c] sm:$0xf]
        %v536 = vld [vmem:[%s360 + $0x240] sm:$0xff]
        %v537 = vld [vmem:[%s360 + $0x248] sm:$0xf]
        %v538 = vld [vmem:[%s360 + $0x24c] sm:$0xff]
        %v539 = vld [vmem:[%s360 + $0x254] sm:$0xf]
        %v540 = vld [vmem:[%s360 + $0x258] sm:$0xff]
        %v541 = vld [vmem:[%s360 + $0x260] sm:$0xf]
        %v542 = vld [vmem:[%s360 + $0x264] sm:$0xff]
        %v543 = vld [vmem:[%s360 + $0x26c] sm:$0xf]
        %v544 = vld [vmem:[%s360 + $0x270] sm:$0xff]
        %v545 = vld [vmem:[%s360 + $0x278] sm:$0xf]
        %v546 = vld [vmem:[%s360 + $0x27c] sm:$0xff]
        %v547 = vld [vmem:[%s360 + $0x284] sm:$0xf]
        %v548 = vld [vmem:[%s360 + $0x288] sm:$0xff]
        %v549 = vld [vmem:[%s360 + $0x290] sm:$0xf]
        %v550 = vld [vmem:[%s360 + $0x294] sm:$0xff]
        %v551 = vld [vmem:[%s360 + $0x29c] sm:$0xf]
        %v552 = vld [vmem:[%s360 + $0x2a0] sm:$0xff]
        %v553 = vld [vmem:[%s360 + $0x2a8] sm:$0xf]
        %v554 = vld [vmem:[%s360 + $0x2ac] sm:$0xff]
        %v555 = vld [vmem:[%s360 + $0x2b4] sm:$0xf]
        %v556 = vld [vmem:[%s360 + $0x2b8] sm:$0xff]
        %v557 = vld [vmem:[%s360 + $0x2c0] sm:$0xf]
        %v558 = vld [vmem:[%s360 + $0x2c4] sm:$0xff]
        %v559 = vld [vmem:[%s360 + $0x2cc] sm:$0xf]
        %v560 = vld [vmem:[%s360 + $0x2d0] sm:$0xff]
        %v561 = vld [vmem:[%s360 + $0x2d8] sm:$0xf]
        %v562 = vld [vmem:[%s360 + $0x2dc] sm:$0xff]
        %v563 = vld [vmem:[%s360 + $0x2e4] sm:$0xf]
        %v564 = vld [vmem:[%s360 + $0x2e8] sm:$0xff]
        %v565 = vld [vmem:[%s360 + $0x2f0] sm:$0xf]
        %v566 = vld [vmem:[%s360 + $0x2f4] sm:$0xff]
        %v567 = vld [vmem:[%s360 + $0x2fc] sm:$0xf]
        %v568 = vld [vmem:[%s360 + $0x300] sm:$0xff]
        %v569 = vld [vmem:[%s360 + $0x308] sm:$0xf]
        %v570 = vld [vmem:[%s360 + $0x30c] sm:$0xff]
        %v571 = vld [vmem:[%s360 + $0x314] sm:$0xf]
        %v572 = vld [vmem:[%s360 + $0x318] sm:$0xff]
        %v573 = vld [vmem:[%s360 + $0x320] sm:$0xf]
        %v574 = vld [vmem:[%s360 + $0x324] sm:$0xff]
        %v575 = vld [vmem:[%s360 + $0x32c] sm:$0xf]
        %v576 = vld [vmem:[%s360 + $0x330] sm:$0xff]
        %v577 = vld [vmem:[%s360 + $0x338] sm:$0xf]
        %v578 = vld [vmem:[%s360 + $0x33c] sm:$0xff]
        %v579 = vld [vmem:[%s360 + $0x344] sm:$0xf]
        %v580 = vld [vmem:[%s360 + $0x348] sm:$0xff]
        %v581 = vld [vmem:[%s360 + $0x350] sm:$0xf]
        %v582 = vld [vmem:[%s360 + $0x354] sm:$0xff]
        %v583 = vld [vmem:[%s360 + $0x35c] sm:$0xf]
        %v584 = vld [vmem:[%s360 + $0x360] sm:$0xff]
        %v585 = vld [vmem:[%s360 + $0x368] sm:$0xf]
        %v586 = vld [vmem:[%s360 + $0x36c] sm:$0xff]
        %v587 = vld [vmem:[%s360 + $0x374] sm:$0xf]
        %v588 = vld [vmem:[%s360 + $0x378] sm:$0xff]
        %v589 = vld [vmem:[%s360 + $0x380] sm:$0xf]
        %v590 = vld [vmem:[%s360 + $0x384] sm:$0xff]
        %v591 = vld [vmem:[%s360 + $0x38c] sm:$0xf]
        %v592 = vld [vmem:[%s360 + $0x390] sm:$0xff]
        %v593 = vld [vmem:[%s360 + $0x398] sm:$0xf]
        %v594 = vld [vmem:[%s360 + $0x39c] sm:$0xff]
        %v595 = vld [vmem:[%s360 + $0x3a4] sm:$0xf]
        %v596 = vld [vmem:[%s360 + $0x3a8] sm:$0xff]
        %v597 = vld [vmem:[%s360 + $0x3b0] sm:$0xf]
        %v598 = vld [vmem:[%s360 + $0x3b4] sm:$0xff]
        %v599 = vld [vmem:[%s360 + $0x3bc] sm:$0xf]
        %v600 = vld [vmem:[%s360 + $0x3c0] sm:$0xff]
        %v601 = vld [vmem:[%s360 + $0x3c8] sm:$0xf]
        %v602 = vld [vmem:[%s360 + $0x3cc] sm:$0xff]
        %v603 = vld [vmem:[%s360 + $0x3d4] sm:$0xf]
        %v604 = vld [vmem:[%s360 + $0x3d8] sm:$0xff]
        %v605 = vld [vmem:[%s360 + $0x3e0] sm:$0xf]
        %v606 = vld [vmem:[%s360 + $0x3e4] sm:$0xff]
        %v607 = vld [vmem:[%s360 + $0x3ec] sm:$0xf]
        %v608 = vld [vmem:[%s360 + $0x3f0] sm:$0xff]
        %v609 = vld [vmem:[%s360 + $0x3f8] sm:$0xf]
        %v610 = vld [vmem:[%s360 + $0x3fc] sm:$0xff]
        %v611 = vld [vmem:[%s360 + $0x404] sm:$0xf]
        %v612 = vld [vmem:[%s360 + $0x408] sm:$0xff]
        %v613 = vld [vmem:[%s360 + $0x410] sm:$0xf]
        %v614 = vld [vmem:[%s360 + $0x414] sm:$0xff]
        %v615 = vld [vmem:[%s360 + $0x41c] sm:$0xf]
        %v616 = vld [vmem:[%s360 + $0x420] sm:$0xff]
        %v617 = vld [vmem:[%s360 + $0x428] sm:$0xf]
        %v618 = vld [vmem:[%s360 + $0x42c] sm:$0xff]
        %v619 = vld [vmem:[%s360 + $0x434] sm:$0xf]
        %v620 = vld [vmem:[%s360 + $0x438] sm:$0xff]
        %v621 = vld [vmem:[%s360 + $0x440] sm:$0xf]
        %v622 = vld [vmem:[%s360 + $0x444] sm:$0xff]
        %v623 = vld [vmem:[%s360 + $0x44c] sm:$0xf]
        %v624 = vld [vmem:[%s360 + $0x450] sm:$0xff]
        %v625 = vld [vmem:[%s360 + $0x458] sm:$0xf]
        %v626 = vld [vmem:[%s360 + $0x45c] sm:$0xff]
        %v627 = vld [vmem:[%s360 + $0x464] sm:$0xf]
        %v628 = vld [vmem:[%s360 + $0x468] sm:$0xff]
        %v629 = vld [vmem:[%s360 + $0x470] sm:$0xf]
        %v630 = vld [vmem:[%s360 + $0x474] sm:$0xff]
        %v631 = vld [vmem:[%s360 + $0x47c] sm:$0xf]
        %v632 = vld [vmem:[%s360 + $0x480] sm:$0xff]
        %v633 = vld [vmem:[%s360 + $0x488] sm:$0xf]
        %v634 = vld [vmem:[%s360 + $0x48c] sm:$0xff]
        %v635 = vld [vmem:[%s360 + $0x494] sm:$0xf]
        %v636 = vld [vmem:[%s360 + $0x498] sm:$0xff]
        %v637 = vld [vmem:[%s360 + $0x4a0] sm:$0xf]
        %v638 = vld [vmem:[%s360 + $0x4a4] sm:$0xff]
        %v639 = vld [vmem:[%s360 + $0x4ac] sm:$0xf]
        %v640 = vld [vmem:[%s360 + $0x4b0] sm:$0xff]
        %v641 = vld [vmem:[%s360 + $0x4b8] sm:$0xf]
        %v642 = vld [vmem:[%s360 + $0x4bc] sm:$0xff]
        %v643 = vld [vmem:[%s360 + $0x4c4] sm:$0xf]
        %v644 = vld [vmem:[%s360 + $0x4c8] sm:$0xff]
        %v645 = vld [vmem:[%s360 + $0x4d0] sm:$0xf]
        %v646 = vld [vmem:[%s360 + $0x4d4] sm:$0xff]
        %v647 = vld [vmem:[%s360 + $0x4dc] sm:$0xf]
        %v648 = vld [vmem:[%s360 + $0x4e0] sm:$0xff]
        %v649 = vld [vmem:[%s360 + $0x4e8] sm:$0xf]
        %v650 = vld [vmem:[%s360 + $0x4ec] sm:$0xff]
        %v651 = vld [vmem:[%s360 + $0x4f4] sm:$0xf]
        %v652 = vld [vmem:[%s360 + $0x4f8] sm:$0xff]
        %v653 = vld [vmem:[%s360 + $0x500] sm:$0xf]
        %v654 = vld [vmem:[%s360 + $0x504] sm:$0xff]
        %v655 = vld [vmem:[%s360 + $0x50c] sm:$0xf]
        %v656 = vld [vmem:[%s360 + $0x510] sm:$0xff]
        %v657 = vld [vmem:[%s360 + $0x518] sm:$0xf]
        %v658 = vld [vmem:[%s360 + $0x51c] sm:$0xff]
        %v659 = vld [vmem:[%s360 + $0x524] sm:$0xf]
        %v660 = vld [vmem:[%s360 + $0x528] sm:$0xff]
        %v661 = vld [vmem:[%s360 + $0x530] sm:$0xf]
        %v662 = vld [vmem:[%s360 + $0x534] sm:$0xff]
        %v663 = vld [vmem:[%s360 + $0x53c] sm:$0xf]
        %v664 = vld [vmem:[%s360 + $0x540] sm:$0xff]
        %v665 = vld [vmem:[%s360 + $0x548] sm:$0xf]
        %v666 = vld [vmem:[%s360 + $0x54c] sm:$0xff]
        %v667 = vld [vmem:[%s360 + $0x554] sm:$0xf]
        %v668 = vld [vmem:[%s360 + $0x558] sm:$0xff]
        %v669 = vld [vmem:[%s360 + $0x560] sm:$0xf]
        %v670 = vld [vmem:[%s360 + $0x564] sm:$0xff]
        %v671 = vld [vmem:[%s360 + $0x56c] sm:$0xf]
        %v672 = vld [vmem:[%s360 + $0x570] sm:$0xff]
        %v673 = vld [vmem:[%s360 + $0x578] sm:$0xf]
        %v674 = vld [vmem:[%s360 + $0x57c] sm:$0xff]
        %v675 = vld [vmem:[%s360 + $0x584] sm:$0xf]
        %v676 = vld [vmem:[%s360 + $0x588] sm:$0xff]
        %v677 = vld [vmem:[%s360 + $0x590] sm:$0xf]
        %v678 = vld [vmem:[%s360 + $0x594] sm:$0xff]
        %v679 = vld [vmem:[%s360 + $0x59c] sm:$0xf]
        %v680 = vld [vmem:[%s360 + $0x5a0] sm:$0xff]
        %v681 = vld [vmem:[%s360 + $0x5a8] sm:$0xf]
        %v682 = vld [vmem:[%s360 + $0x5ac] sm:$0xff]
        %v683 = vld [vmem:[%s360 + $0x5b4] sm:$0xf]
        %v684 = vld [vmem:[%s360 + $0x5b8] sm:$0xff]
        %v685 = vld [vmem:[%s360 + $0x5c0] sm:$0xf]
        %v686 = vld [vmem:[%s360 + $0x5c4] sm:$0xff]
        %v687 = vld [vmem:[%s360 + $0x5cc] sm:$0xf]
        %v688 = vld [vmem:[%s360 + $0x5d0] sm:$0xff]
        %v689 = vld [vmem:[%s360 + $0x5d8] sm:$0xf]
        %v690 = vld [vmem:[%s360 + $0x5dc] sm:$0xff]
        %v691 = vld [vmem:[%s360 + $0x5e4] sm:$0xf]
        %v692 = vld [vmem:[%s360 + $0x5e8] sm:$0xff]
        %v693 = vld [vmem:[%s360 + $0x5f0] sm:$0xf]
        %v694 = vld [vmem:[%s360 + $0x5f4] sm:$0xff]
        %v695 = vld [vmem:[%s360 + $0x5fc] sm:$0xf]
        %v952 = vunpack.c.l.b16 %v440
        %v953 = vunpack.c.h.b16 %v440
        %v954 = vunpack.c.l.b16 %v441
        %v955 = vunpack.c.l.b16 %v442
        %v956 = vunpack.c.h.b16 %v442
        %v957 = vunpack.c.l.b16 %v443
        %v958 = vunpack.c.l.b16 %v444
        %v959 = vunpack.c.h.b16 %v444
        %v960 = vunpack.c.l.b16 %v445
        %v961 = vunpack.c.l.b16 %v446
        %v962 = vunpack.c.h.b16 %v446
        %v963 = vunpack.c.l.b16 %v447
        %v964 = vunpack.c.l.b16 %v448
        %v965 = vunpack.c.h.b16 %v448
        %v966 = vunpack.c.l.b16 %v449
        %v967 = vunpack.c.l.b16 %v450
        %v968 = vunpack.c.h.b16 %v450
        %v969 = vunpack.c.l.b16 %v451
        %v970 = vunpack.c.l.b16 %v452
        %v971 = vunpack.c.h.b16 %v452
        %v972 = vunpack.c.l.b16 %v453
        %v973 = vunpack.c.l.b16 %v454
        %v974 = vunpack.c.h.b16 %v454
        %v975 = vunpack.c.l.b16 %v455
        %v976 = vunpack.c.l.b16 %v456
        %v977 = vunpack.c.h.b16 %v456
        %v978 = vunpack.c.l.b16 %v457
        %v979 = vunpack.c.l.b16 %v458
        %v980 = vunpack.c.h.b16 %v458
        %v981 = vunpack.c.l.b16 %v459
        %v982 = vunpack.c.l.b16 %v460
        %v983 = vunpack.c.h.b16 %v460
        %v984 = vunpack.c.l.b16 %v461
        %v985 = vunpack.c.l.b16 %v462
        %v986 = vunpack.c.h.b16 %v462
        %v987 = vunpack.c.l.b16 %v463
        %v988 = vunpack.c.l.b16 %v464
        %v989 = vunpack.c.h.b16 %v464
        %v990 = vunpack.c.l.b16 %v465
        %v991 = vunpack.c.l.b16 %v466
        %v992 = vunpack.c.h.b16 %v466
        %v993 = vunpack.c.l.b16 %v467
        %v994 = vunpack.c.l.b16 %v468
        %v995 = vunpack.c.h.b16 %v468
        %v996 = vunpack.c.l.b16 %v469
        %v997 = vunpack.c.l.b16 %v470
        %v998 = vunpack.c.h.b16 %v470
        %v999 = vunpack.c.l.b16 %v471
        %v1000 = vunpack.c.l.b16 %v472
        %v1001 = vunpack.c.h.b16 %v472
        %v1002 = vunpack.c.l.b16 %v473
        %v1003 = vunpack.c.l.b16 %v474
        %v1004 = vunpack.c.h.b16 %v474
        %v1005 = vunpack.c.l.b16 %v475
        %v1006 = vunpack.c.l.b16 %v476
        %v1007 = vunpack.c.h.b16 %v476
        %v1008 = vunpack.c.l.b16 %v477
        %v1009 = vunpack.c.l.b16 %v478
        %v1010 = vunpack.c.h.b16 %v478
        %v1011 = vunpack.c.l.b16 %v479
        %v1012 = vunpack.c.l.b16 %v480
        %v1013 = vunpack.c.h.b16 %v480
        %v1014 = vunpack.c.l.b16 %v481
        %v1015 = vunpack.c.l.b16 %v482
        %v1016 = vunpack.c.h.b16 %v482
        %v1017 = vunpack.c.l.b16 %v483
        %v1018 = vunpack.c.l.b16 %v484
        %v1019 = vunpack.c.h.b16 %v484
        %v1020 = vunpack.c.l.b16 %v485
        %v1021 = vunpack.c.l.b16 %v486
        %v1022 = vunpack.c.h.b16 %v486
        %v1023 = vunpack.c.l.b16 %v487
        %v1024 = vunpack.c.l.b16 %v488
        %v1025 = vunpack.c.h.b16 %v488
        %v1026 = vunpack.c.l.b16 %v489
        %v1027 = vunpack.c.l.b16 %v490
        %v1028 = vunpack.c.h.b16 %v490
        %v1029 = vunpack.c.l.b16 %v491
        %v1030 = vunpack.c.l.b16 %v492
        %v1031 = vunpack.c.h.b16 %v492
        %v1032 = vunpack.c.l.b16 %v493
        %v1033 = vunpack.c.l.b16 %v494
        %v1034 = vunpack.c.h.b16 %v494
        %v1035 = vunpack.c.l.b16 %v495
        %v1036 = vunpack.c.l.b16 %v496
        %v1037 = vunpack.c.h.b16 %v496
        %v1038 = vunpack.c.l.b16 %v497
        %v1039 = vunpack.c.l.b16 %v498
        %v1040 = vunpack.c.h.b16 %v498
        %v1041 = vunpack.c.l.b16 %v499
        %v1042 = vunpack.c.l.b16 %v500
        %v1043 = vunpack.c.h.b16 %v500
        %v1044 = vunpack.c.l.b16 %v501
        %v1045 = vunpack.c.l.b16 %v502
        %v1046 = vunpack.c.h.b16 %v502
        %v1047 = vunpack.c.l.b16 %v503
        %v1048 = vunpack.c.l.b16 %v504
        %v1049 = vunpack.c.h.b16 %v504
        %v1050 = vunpack.c.l.b16 %v505
        %v1051 = vunpack.c.l.b16 %v506
        %v1052 = vunpack.c.h.b16 %v506
        %v1053 = vunpack.c.l.b16 %v507
        %v1054 = vunpack.c.l.b16 %v508
        %v1055 = vunpack.c.h.b16 %v508
        %v1056 = vunpack.c.l.b16 %v509
        %v1057 = vunpack.c.l.b16 %v510
        %v1058 = vunpack.c.h.b16 %v510
        %v1059 = vunpack.c.l.b16 %v511
        %v1060 = vunpack.c.l.b16 %v512
        %v1061 = vunpack.c.h.b16 %v512
        %v1062 = vunpack.c.l.b16 %v513
        %v1063 = vunpack.c.l.b16 %v514
        %v1064 = vunpack.c.h.b16 %v514
        %v1065 = vunpack.c.l.b16 %v515
        %v1066 = vunpack.c.l.b16 %v516
        %v1067 = vunpack.c.h.b16 %v516
        %v1068 = vunpack.c.l.b16 %v517
        %v1069 = vunpack.c.l.b16 %v518
        %v1070 = vunpack.c.h.b16 %v518
        %v1071 = vunpack.c.l.b16 %v519
        %v1072 = vunpack.c.l.b16 %v520
        %v1073 = vunpack.c.h.b16 %v520
        %v1074 = vunpack.c.l.b16 %v521
        %v1075 = vunpack.c.l.b16 %v522
        %v1076 = vunpack.c.h.b16 %v522
        %v1077 = vunpack.c.l.b16 %v523
        %v1078 = vunpack.c.l.b16 %v524
        %v1079 = vunpack.c.h.b16 %v524
        %v1080 = vunpack.c.l.b16 %v525
        %v1081 = vunpack.c.l.b16 %v526
        %v1082 = vunpack.c.h.b16 %v526
        %v1083 = vunpack.c.l.b16 %v527
        %v1084 = vunpack.c.l.b16 %v528
        %v1085 = vunpack.c.h.b16 %v528
        %v1086 = vunpack.c.l.b16 %v529
        %v1087 = vunpack.c.l.b16 %v530
        %v1088 = vunpack.c.h.b16 %v530
        %v1089 = vunpack.c.l.b16 %v531
        %v1090 = vunpack.c.l.b16 %v532
        %v1091 = vunpack.c.h.b16 %v532
        %v1092 = vunpack.c.l.b16 %v533
        %v1093 = vunpack.c.l.b16 %v534
        %v1094 = vunpack.c.h.b16 %v534
        %v1095 = vunpack.c.l.b16 %v535
        %v1096 = vunpack.c.l.b16 %v536
        %v1097 = vunpack.c.h.b16 %v536
        %v1098 = vunpack.c.l.b16 %v537
        %v1099 = vunpack.c.l.b16 %v538
        %v1100 = vunpack.c.h.b16 %v538
        %v1101 = vunpack.c.l.b16 %v539
        %v1102 = vunpack.c.l.b16 %v540
        %v1103 = vunpack.c.h.b16 %v540
        %v1104 = vunpack.c.l.b16 %v541
        %v1105 = vunpack.c.l.b16 %v542
        %v1106 = vunpack.c.h.b16 %v542
        %v1107 = vunpack.c.l.b16 %v543
        %v1108 = vunpack.c.l.b16 %v544
        %v1109 = vunpack.c.h.b16 %v544
        %v1110 = vunpack.c.l.b16 %v545
        %v1111 = vunpack.c.l.b16 %v546
        %v1112 = vunpack.c.h.b16 %v546
        %v1113 = vunpack.c.l.b16 %v547
        %v1114 = vunpack.c.l.b16 %v548
        %v1115 = vunpack.c.h.b16 %v548
        %v1116 = vunpack.c.l.b16 %v549
        %v1117 = vunpack.c.l.b16 %v550
        %v1118 = vunpack.c.h.b16 %v550
        %v1119 = vunpack.c.l.b16 %v551
        %v1120 = vunpack.c.l.b16 %v552
        %v1121 = vunpack.c.h.b16 %v552
        %v1122 = vunpack.c.l.b16 %v553
        %v1123 = vunpack.c.l.b16 %v554
        %v1124 = vunpack.c.h.b16 %v554
        %v1125 = vunpack.c.l.b16 %v555
        %v1126 = vunpack.c.l.b16 %v556
        %v1127 = vunpack.c.h.b16 %v556
        %v1128 = vunpack.c.l.b16 %v557
        %v1129 = vunpack.c.l.b16 %v558
        %v1130 = vunpack.c.h.b16 %v558
        %v1131 = vunpack.c.l.b16 %v559
        %v1132 = vunpack.c.l.b16 %v560
        %v1133 = vunpack.c.h.b16 %v560
        %v1134 = vunpack.c.l.b16 %v561
        %v1135 = vunpack.c.l.b16 %v562
        %v1136 = vunpack.c.h.b16 %v562
        %v1137 = vunpack.c.l.b16 %v563
        %v1138 = vunpack.c.l.b16 %v564
        %v1139 = vunpack.c.h.b16 %v564
        %v1140 = vunpack.c.l.b16 %v565
        %v1141 = vunpack.c.l.b16 %v566
        %v1142 = vunpack.c.h.b16 %v566
        %v1143 = vunpack.c.l.b16 %v567
        %v1144 = vunpack.c.l.b16 %v568
        %v1145 = vunpack.c.h.b16 %v568
        %v1146 = vunpack.c.l.b16 %v569
        %v1147 = vunpack.c.l.b16 %v570
        %v1148 = vunpack.c.h.b16 %v570
        %v1149 = vunpack.c.l.b16 %v571
        %v1150 = vunpack.c.l.b16 %v572
        %v1151 = vunpack.c.h.b16 %v572
        %v1152 = vunpack.c.l.b16 %v573
        %v1153 = vunpack.c.l.b16 %v574
        %v1154 = vunpack.c.h.b16 %v574
        %v1155 = vunpack.c.l.b16 %v575
        %v1156 = vunpack.c.l.b16 %v576
        %v1157 = vunpack.c.h.b16 %v576
        %v1158 = vunpack.c.l.b16 %v577
        %v1159 = vunpack.c.l.b16 %v578
        %v1160 = vunpack.c.h.b16 %v578
        %v1161 = vunpack.c.l.b16 %v579
        %v1162 = vunpack.c.l.b16 %v580
        %v1163 = vunpack.c.h.b16 %v580
        %v1164 = vunpack.c.l.b16 %v581
        %v1165 = vunpack.c.l.b16 %v582
        %v1166 = vunpack.c.h.b16 %v582
        %v1167 = vunpack.c.l.b16 %v583
        %v1168 = vunpack.c.l.b16 %v584
        %v1169 = vunpack.c.h.b16 %v584
        %v1170 = vunpack.c.l.b16 %v585
        %v1171 = vunpack.c.l.b16 %v586
        %v1172 = vunpack.c.h.b16 %v586
        %v1173 = vunpack.c.l.b16 %v587
        %v1174 = vunpack.c.l.b16 %v588
        %v1175 = vunpack.c.h.b16 %v588
        %v1176 = vunpack.c.l.b16 %v589
        %v1177 = vunpack.c.l.b16 %v590
        %v1178 = vunpack.c.h.b16 %v590
        %v1179 = vunpack.c.l.b16 %v591
        %v1180 = vunpack.c.l.b16 %v592
        %v1181 = vunpack.c.h.b16 %v592
        %v1182 = vunpack.c.l.b16 %v593
        %v1183 = vunpack.c.l.b16 %v594
        %v1184 = vunpack.c.h.b16 %v594
        %v1185 = vunpack.c.l.b16 %v595
        %v1186 = vunpack.c.l.b16 %v596
        %v1187 = vunpack.c.h.b16 %v596
        %v1188 = vunpack.c.l.b16 %v597
        %v1189 = vunpack.c.l.b16 %v598
        %v1190 = vunpack.c.h.b16 %v598
        %v1191 = vunpack.c.l.b16 %v599
        %v1192 = vunpack.c.l.b16 %v600
        %v1193 = vunpack.c.h.b16 %v600
        %v1194 = vunpack.c.l.b16 %v601
        %v1195 = vunpack.c.l.b16 %v602
        %v1196 = vunpack.c.h.b16 %v602
        %v1197 = vunpack.c.l.b16 %v603
        %v1198 = vunpack.c.l.b16 %v604
        %v1199 = vunpack.c.h.b16 %v604
        %v1200 = vunpack.c.l.b16 %v605
        %v1201 = vunpack.c.l.b16 %v606
        %v1202 = vunpack.c.h.b16 %v606
        %v1203 = vunpack.c.l.b16 %v607
        %v1204 = vunpack.c.l.b16 %v608
        %v1205 = vunpack.c.h.b16 %v608
        %v1206 = vunpack.c.l.b16 %v609
        %v1207 = vunpack.c.l.b16 %v610
        %v1208 = vunpack.c.h.b16 %v610
        %v1209 = vunpack.c.l.b16 %v611
        %v1210 = vunpack.c.l.b16 %v612
        %v1211 = vunpack.c.h.b16 %v612
        %v1212 = vunpack.c.l.b16 %v613
        %v1213 = vunpack.c.l.b16 %v614
        %v1214 = vunpack.c.h.b16 %v614
        %v1215 = vunpack.c.l.b16 %v615
        %v1216 = vunpack.c.l.b16 %v616
        %v1217 = vunpack.c.h.b16 %v616
        %v1218 = vunpack.c.l.b16 %v617
        %v1219 = vunpack.c.l.b16 %v618
        %v1220 = vunpack.c.h.b16 %v618
        %v1221 = vunpack.c.l.b16 %v619
        %v1222 = vunpack.c.l.b16 %v620
        %v1223 = vunpack.c.h.b16 %v620
        %v1224 = vunpack.c.l.b16 %v621
        %v1225 = vunpack.c.l.b16 %v622
        %v1226 = vunpack.c.h.b16 %v622
        %v1227 = vunpack.c.l.b16 %v623
        %v1228 = vunpack.c.l.b16 %v624
        %v1229 = vunpack.c.h.b16 %v624
        %v1230 = vunpack.c.l.b16 %v625
        %v1231 = vunpack.c.l.b16 %v626
        %v1232 = vunpack.c.h.b16 %v626
        %v1233 = vunpack.c.l.b16 %v627
        %v1234 = vunpack.c.l.b16 %v628
        %v1235 = vunpack.c.h.b16 %v628
        %v1236 = vunpack.c.l.b16 %v629
        %v1237 = vunpack.c.l.b16 %v630
        %v1238 = vunpack.c.h.b16 %v630
        %v1239 = vunpack.c.l.b16 %v631
        %v1240 = vunpack.c.l.b16 %v632
        %v1241 = vunpack.c.h.b16 %v632
        %v1242 = vunpack.c.l.b16 %v633
        %v1243 = vunpack.c.l.b16 %v634
        %v1244 = vunpack.c.h.b16 %v634
        %v1245 = vunpack.c.l.b16 %v635
        %v1246 = vunpack.c.l.b16 %v636
        %v1247 = vunpack.c.h.b16 %v636
        %v1248 = vunpack.c.l.b16 %v637
        %v1249 = vunpack.c.l.b16 %v638
        %v1250 = vunpack.c.h.b16 %v638
        %v1251 = vunpack.c.l.b16 %v639
        %v1252 = vunpack.c.l.b16 %v640
        %v1253 = vunpack.c.h.b16 %v640
        %v1254 = vunpack.c.l.b16 %v641
        %v1255 = vunpack.c.l.b16 %v642
        %v1256 = vunpack.c.h.b16 %v642
        %v1257 = vunpack.c.l.b16 %v643
        %v1258 = vunpack.c.l.b16 %v644
        %v1259 = vunpack.c.h.b16 %v644
        %v1260 = vunpack.c.l.b16 %v645
        %v1261 = vunpack.c.l.b16 %v646
        %v1262 = vunpack.c.h.b16 %v646
        %v1263 = vunpack.c.l.b16 %v647
        %v1264 = vunpack.c.l.b16 %v648
        %v1265 = vunpack.c.h.b16 %v648
        %v1266 = vunpack.c.l.b16 %v649
        %v1267 = vunpack.c.l.b16 %v650
        %v1268 = vunpack.c.h.b16 %v650
        %v1269 = vunpack.c.l.b16 %v651
        %v1270 = vunpack.c.l.b16 %v652
        %v1271 = vunpack.c.h.b16 %v652
        %v1272 = vunpack.c.l.b16 %v653
        %v1273 = vunpack.c.l.b16 %v654
        %v1274 = vunpack.c.h.b16 %v654
        %v1275 = vunpack.c.l.b16 %v655
        %v1276 = vunpack.c.l.b16 %v656
        %v1277 = vunpack.c.h.b16 %v656
        %v1278 = vunpack.c.l.b16 %v657
        %v1279 = vunpack.c.l.b16 %v658
        %v1280 = vunpack.c.h.b16 %v658
        %v1281 = vunpack.c.l.b16 %v659
        %v1282 = vunpack.c.l.b16 %v660
        %v1283 = vunpack.c.h.b16 %v660
        %v1284 = vunpack.c.l.b16 %v661
        %v1285 = vunpack.c.l.b16 %v662
        %v1286 = vunpack.c.h.b16 %v662
        %v1287 = vunpack.c.l.b16 %v663
        %v1288 = vunpack.c.l.b16 %v664
        %v1289 = vunpack.c.h.b16 %v664
        %v1290 = vunpack.c.l.b16 %v665
        %v1291 = vunpack.c.l.b16 %v666
        %v1292 = vunpack.c.h.b16 %v666
        %v1293 = vunpack.c.l.b16 %v667
        %v1294 = vunpack.c.l.b16 %v668
        %v1295 = vunpack.c.h.b16 %v668
        %v1296 = vunpack.c.l.b16 %v669
        %v1297 = vunpack.c.l.b16 %v670
        %v1298 = vunpack.c.h.b16 %v670
        %v1299 = vunpack.c.l.b16 %v671
        %v1300 = vunpack.c.l.b16 %v672
        %v1301 = vunpack.c.h.b16 %v672
        %v1302 = vunpack.c.l.b16 %v673
        %v1303 = vunpack.c.l.b16 %v674
        %v1304 = vunpack.c.h.b16 %v674
        %v1305 = vunpack.c.l.b16 %v675
        %v1306 = vunpack.c.l.b16 %v676
        %v1307 = vunpack.c.h.b16 %v676
        %v1308 = vunpack.c.l.b16 %v677
        %v1309 = vunpack.c.l.b16 %v678
        %v1310 = vunpack.c.h.b16 %v678
        %v1311 = vunpack.c.l.b16 %v679
        %v1312 = vunpack.c.l.b16 %v680
        %v1313 = vunpack.c.h.b16 %v680
        %v1314 = vunpack.c.l.b16 %v681
        %v1315 = vunpack.c.l.b16 %v682
        %v1316 = vunpack.c.h.b16 %v682
        %v1317 = vunpack.c.l.b16 %v683
        %v1318 = vunpack.c.l.b16 %v684
        %v1319 = vunpack.c.h.b16 %v684
        %v1320 = vunpack.c.l.b16 %v685
        %v1321 = vunpack.c.l.b16 %v686
        %v1322 = vunpack.c.h.b16 %v686
        %v1323 = vunpack.c.l.b16 %v687
        %v1324 = vunpack.c.l.b16 %v688
        %v1325 = vunpack.c.h.b16 %v688
        %v1326 = vunpack.c.l.b16 %v689
        %v1327 = vunpack.c.l.b16 %v690
        %v1328 = vunpack.c.h.b16 %v690
        %v1329 = vunpack.c.l.b16 %v691
        %v1330 = vunpack.c.l.b16 %v692
        %v1331 = vunpack.c.h.b16 %v692
        %v1332 = vunpack.c.l.b16 %v693
        %v1333 = vunpack.c.l.b16 %v694
        %v1334 = vunpack.c.h.b16 %v694
        %v1335 = vunpack.c.l.b16 %v695
        %v1336 = vpack.c.b16 %v955, %v952
        %v1337 = vpack.c.b16 %v956, %v953
        %v1338 = vpack.c.b16 %v957, %v954
        %v1339 = vpack.c.b16 %v961, %v958
        %v1340 = vpack.c.b16 %v962, %v959
        %v1341 = vpack.c.b16 %v963, %v960
        %v1342 = vpack.c.b16 %v967, %v964
        %v1343 = vpack.c.b16 %v968, %v965
        %v1344 = vpack.c.b16 %v969, %v966
        %v1345 = vpack.c.b16 %v973, %v970
        %v1346 = vpack.c.b16 %v974, %v971
        %v1347 = vpack.c.b16 %v975, %v972
        %v1348 = vpack.c.b16 %v979, %v976
        %v1349 = vpack.c.b16 %v980, %v977
        %v1350 = vpack.c.b16 %v981, %v978
        %v1351 = vpack.c.b16 %v985, %v982
        %v1352 = vpack.c.b16 %v986, %v983
        %v1353 = vpack.c.b16 %v987, %v984
        %v1354 = vpack.c.b16 %v991, %v988
        %v1355 = vpack.c.b16 %v992, %v989
        %v1356 = vpack.c.b16 %v993, %v990
        %v1357 = vpack.c.b16 %v997, %v994
        %v1358 = vpack.c.b16 %v998, %v995
        %v1359 = vpack.c.b16 %v999, %v996
        %v1360 = vpack.c.b16 %v1003, %v1000
        %v1361 = vpack.c.b16 %v1004, %v1001
        %v1362 = vpack.c.b16 %v1005, %v1002
        %v1363 = vpack.c.b16 %v1009, %v1006
        %v1364 = vpack.c.b16 %v1010, %v1007
        %v1365 = vpack.c.b16 %v1011, %v1008
        %v1366 = vpack.c.b16 %v1015, %v1012
        %v1367 = vpack.c.b16 %v1016, %v1013
        %v1368 = vpack.c.b16 %v1017, %v1014
        %v1369 = vpack.c.b16 %v1021, %v1018
        %v1370 = vpack.c.b16 %v1022, %v1019
        %v1371 = vpack.c.b16 %v1023, %v1020
        %v1372 = vpack.c.b16 %v1027, %v1024
        %v1373 = vpack.c.b16 %v1028, %v1025
        %v1374 = vpack.c.b16 %v1029, %v1026
        %v1375 = vpack.c.b16 %v1033, %v1030
        %v1376 = vpack.c.b16 %v1034, %v1031
        %v1377 = vpack.c.b16 %v1035, %v1032
        %v1378 = vpack.c.b16 %v1039, %v1036
        %v1379 = vpack.c.b16 %v1040, %v1037
        %v1380 = vpack.c.b16 %v1041, %v1038
        %v1381 = vpack.c.b16 %v1045, %v1042
        %v1382 = vpack.c.b16 %v1046, %v1043
        %v1383 = vpack.c.b16 %v1047, %v1044
        %v1384 = vpack.c.b16 %v1051, %v1048
        %v1385 = vpack.c.b16 %v1052, %v1049
        %v1386 = vpack.c.b16 %v1053, %v1050
        %v1387 = vpack.c.b16 %v1057, %v1054
        %v1388 = vpack.c.b16 %v1058, %v1055
        %v1389 = vpack.c.b16 %v1059, %v1056
        %v1390 = vpack.c.b16 %v1063, %v1060
        %v1391 = vpack.c.b16 %v1064, %v1061
        %v1392 = vpack.c.b16 %v1065, %v1062
        %v1393 = vpack.c.b16 %v1069, %v1066
        %v1394 = vpack.c.b16 %v1070, %v1067
        %v1395 = vpack.c.b16 %v1071, %v1068
        %v1396 = vpack.c.b16 %v1075, %v1072
        %v1397 = vpack.c.b16 %v1076, %v1073
        %v1398 = vpack.c.b16 %v1077, %v1074
        %v1399 = vpack.c.b16 %v1081, %v1078
        %v1400 = vpack.c.b16 %v1082, %v1079
        %v1401 = vpack.c.b16 %v1083, %v1080
        %v1402 = vpack.c.b16 %v1087, %v1084
        %v1403 = vpack.c.b16 %v1088, %v1085
        %v1404 = vpack.c.b16 %v1089, %v1086
        %v1405 = vpack.c.b16 %v1093, %v1090
        %v1406 = vpack.c.b16 %v1094, %v1091
        %v1407 = vpack.c.b16 %v1095, %v1092
        %v1408 = vpack.c.b16 %v1099, %v1096
        %v1409 = vpack.c.b16 %v1100, %v1097
        %v1410 = vpack.c.b16 %v1101, %v1098
        %v1411 = vpack.c.b16 %v1105, %v1102
        %v1412 = vpack.c.b16 %v1106, %v1103
        %v1413 = vpack.c.b16 %v1107, %v1104
        %v1414 = vpack.c.b16 %v1111, %v1108
        %v1415 = vpack.c.b16 %v1112, %v1109
        %v1416 = vpack.c.b16 %v1113, %v1110
        %v1417 = vpack.c.b16 %v1117, %v1114
        %v1418 = vpack.c.b16 %v1118, %v1115
        %v1419 = vpack.c.b16 %v1119, %v1116
        %v1420 = vpack.c.b16 %v1123, %v1120
        %v1421 = vpack.c.b16 %v1124, %v1121
        %v1422 = vpack.c.b16 %v1125, %v1122
        %v1423 = vpack.c.b16 %v1129, %v1126
        %v1424 = vpack.c.b16 %v1130, %v1127
        %v1425 = vpack.c.b16 %v1131, %v1128
        %v1426 = vpack.c.b16 %v1135, %v1132
        %v1427 = vpack.c.b16 %v1136, %v1133
        %v1428 = vpack.c.b16 %v1137, %v1134
        %v1429 = vpack.c.b16 %v1141, %v1138
        %v1430 = vpack.c.b16 %v1142, %v1139
        %v1431 = vpack.c.b16 %v1143, %v1140
        %v1432 = vpack.c.b16 %v1147, %v1144
        %v1433 = vpack.c.b16 %v1148, %v1145
        %v1434 = vpack.c.b16 %v1149, %v1146
        %v1435 = vpack.c.b16 %v1153, %v1150
        %v1436 = vpack.c.b16 %v1154, %v1151
        %v1437 = vpack.c.b16 %v1155, %v1152
        %v1438 = vpack.c.b16 %v1159, %v1156
        %v1439 = vpack.c.b16 %v1160, %v1157
        %v1440 = vpack.c.b16 %v1161, %v1158
        %v1441 = vpack.c.b16 %v1165, %v1162
        %v1442 = vpack.c.b16 %v1166, %v1163
        %v1443 = vpack.c.b16 %v1167, %v1164
        %v1444 = vpack.c.b16 %v1171, %v1168
        %v1445 = vpack.c.b16 %v1172, %v1169
        %v1446 = vpack.c.b16 %v1173, %v1170
        %v1447 = vpack.c.b16 %v1177, %v1174
        %v1448 = vpack.c.b16 %v1178, %v1175
        %v1449 = vpack.c.b16 %v1179, %v1176
        %v1450 = vpack.c.b16 %v1183, %v1180
        %v1451 = vpack.c.b16 %v1184, %v1181
        %v1452 = vpack.c.b16 %v1185, %v1182
        %v1453 = vpack.c.b16 %v1189, %v1186
        %v1454 = vpack.c.b16 %v1190, %v1187
        %v1455 = vpack.c.b16 %v1191, %v1188
        %v1456 = vpack.c.b16 %v1195, %v1192
        %v1457 = vpack.c.b16 %v1196, %v1193
        %v1458 = vpack.c.b16 %v1197, %v1194
        %v1459 = vpack.c.b16 %v1201, %v1198
        %v1460 = vpack.c.b16 %v1202, %v1199
        %v1461 = vpack.c.b16 %v1203, %v1200
        %v1462 = vpack.c.b16 %v1207, %v1204
        %v1463 = vpack.c.b16 %v1208, %v1205
        %v1464 = vpack.c.b16 %v1209, %v1206
        %v1465 = vpack.c.b16 %v1213, %v1210
        %v1466 = vpack.c.b16 %v1214, %v1211
        %v1467 = vpack.c.b16 %v1215, %v1212
        %v1468 = vpack.c.b16 %v1219, %v1216
        %v1469 = vpack.c.b16 %v1220, %v1217
        %v1470 = vpack.c.b16 %v1221, %v1218
        %v1471 = vpack.c.b16 %v1225, %v1222
        %v1472 = vpack.c.b16 %v1226, %v1223
        %v1473 = vpack.c.b16 %v1227, %v1224
        %v1474 = vpack.c.b16 %v1231, %v1228
        %v1475 = vpack.c.b16 %v1232, %v1229
        %v1476 = vpack.c.b16 %v1233, %v1230
        %v1477 = vpack.c.b16 %v1237, %v1234
        %v1478 = vpack.c.b16 %v1238, %v1235
        %v1479 = vpack.c.b16 %v1239, %v1236
        %v1480 = vpack.c.b16 %v1243, %v1240
        %v1481 = vpack.c.b16 %v1244, %v1241
        %v1482 = vpack.c.b16 %v1245, %v1242
        %v1483 = vpack.c.b16 %v1249, %v1246
        %v1484 = vpack.c.b16 %v1250, %v1247
        %v1485 = vpack.c.b16 %v1251, %v1248
        %v1486 = vpack.c.b16 %v1255, %v1252
        %v1487 = vpack.c.b16 %v1256, %v1253
        %v1488 = vpack.c.b16 %v1257, %v1254
        %v1489 = vpack.c.b16 %v1261, %v1258
        %v1490 = vpack.c.b16 %v1262, %v1259
        %v1491 = vpack.c.b16 %v1263, %v1260
        %v1492 = vpack.c.b16 %v1267, %v1264
        %v1493 = vpack.c.b16 %v1268, %v1265
        %v1494 = vpack.c.b16 %v1269, %v1266
        %v1495 = vpack.c.b16 %v1273, %v1270
        %v1496 = vpack.c.b16 %v1274, %v1271
        %v1497 = vpack.c.b16 %v1275, %v1272
        %v1498 = vpack.c.b16 %v1279, %v1276
        %v1499 = vpack.c.b16 %v1280, %v1277
        %v1500 = vpack.c.b16 %v1281, %v1278
        %v1501 = vpack.c.b16 %v1285, %v1282
        %v1502 = vpack.c.b16 %v1286, %v1283
        %v1503 = vpack.c.b16 %v1287, %v1284
        %v1504 = vpack.c.b16 %v1291, %v1288
        %v1505 = vpack.c.b16 %v1292, %v1289
        %v1506 = vpack.c.b16 %v1293, %v1290
        %v1507 = vpack.c.b16 %v1297, %v1294
        %v1508 = vpack.c.b16 %v1298, %v1295
        %v1509 = vpack.c.b16 %v1299, %v1296
        %v1510 = vpack.c.b16 %v1303, %v1300
        %v1511 = vpack.c.b16 %v1304, %v1301
        %v1512 = vpack.c.b16 %v1305, %v1302
        %v1513 = vpack.c.b16 %v1309, %v1306
        %v1514 = vpack.c.b16 %v1310, %v1307
        %v1515 = vpack.c.b16 %v1311, %v1308
        %v1516 = vpack.c.b16 %v1315, %v1312
        %v1517 = vpack.c.b16 %v1316, %v1313
        %v1518 = vpack.c.b16 %v1317, %v1314
        %v1519 = vpack.c.b16 %v1321, %v1318
        %v1520 = vpack.c.b16 %v1322, %v1319
        %v1521 = vpack.c.b16 %v1323, %v1320
        %v1522 = vpack.c.b16 %v1327, %v1324
        %v1523 = vpack.c.b16 %v1328, %v1325
        %v1524 = vpack.c.b16 %v1329, %v1326
        %v1525 = vpack.c.b16 %v1333, %v1330
        %v1526 = vpack.c.b16 %v1334, %v1331
        %v1527 = vpack.c.b16 %v1335, %v1332
        %1720 = vmatprep.subr.bf16.mxu0 %v1358
        %1721 = vmatpush1.bf16.msra.mxu0 %v1357
        %1722 = vmatprep.subr.bf16.mxu0 %v1355
        %1723 = vmatpush1.bf16.msra.mxu0 %v1354
        %1724 = vmatprep.subr.bf16.mxu0 %v1352
        %1725 = vmatpush1.bf16.msra.mxu0 %v1351
        %1726 = vmatprep.subr.bf16.mxu0 %v1349
        %1727 = vmatpush1.bf16.msra.mxu0 %v1348
        %1728 = vmatprep.subr.bf16.mxu0 %v1346
        %1729 = vmatpush1.bf16.msra.mxu0 %v1345
        %1730 = vmatprep.subr.bf16.mxu0 %v1343
        %1731 = vmatpush1.bf16.msra.mxu0 %v1342
        %1732 = vmatprep.subr.bf16.mxu0 %v1340
        %1733 = vmatpush1.bf16.msra.mxu0 %v1339
        %1734 = vmatprep.subr.bf16.mxu0 %v1337
        %1735 = vmatpush1.bf16.msra.mxu0 %v1336
        %1736 = vmatprep.subr.bf16.mxu0 %v1382
        %1737 = vmatpush2.bf16.msra.mxu0 %v1381
        %1738 = vmatprep.subr.bf16.mxu0 %v1379
        %1739 = vmatpush2.bf16.msra.mxu0 %v1378
        %1740 = vmatprep.subr.bf16.mxu0 %v1376
        %1741 = vmatpush2.bf16.msra.mxu0 %v1375
        %1742 = vmatprep.subr.bf16.mxu0 %v1373
        %1743 = vmatpush2.bf16.msra.mxu0 %v1372
        %1744 = vmatprep.subr.bf16.mxu0 %v1370
        %1745 = vmatpush2.bf16.msra.mxu0 %v1369
        %1746 = vmatprep.subr.bf16.mxu0 %v1367
        %1747 = vmatpush2.bf16.msra.mxu0 %v1366
        %1748 = vmatprep.subr.bf16.mxu0 %v1364
        %1749 = vmatpush2.bf16.msra.mxu0 %v1363
        %1750 = vmatprep.subr.bf16.mxu0 %v1361
        %1751 = vmatpush2.bf16.msra.mxu0 %v1360
        %1752 = vmatprep.mubr.bf16.mxu0 %v430
        %1753 = vmatmul.mubr.bf16.gmra.mxu0 %v429
        %v1754 = vpop.f32.mrf.mxu0
        %v1755 = vadd.f32 0.0, %v1754
        %v1756 = vpop.f32.mrf.mxu0
        %v1757 = vadd.f32 0.0, %v1756
        %v1758 = vpop.f32.mrf.mxu0
        %v1759 = vpop.f32.mrf.mxu0
        %1760 = vdwg.mxu0
        %1761 = vmatprep.subr.bf16.mxu0 %v1406
        %1762 = vmatpush1.bf16.msra.mxu0 %v1405
        %1763 = vmatprep.subr.bf16.mxu0 %v1403
        %1764 = vmatpush1.bf16.msra.mxu0 %v1402
        %1765 = vmatprep.subr.bf16.mxu0 %v1400
        %1766 = vmatpush1.bf16.msra.mxu0 %v1399
        %1767 = vmatprep.subr.bf16.mxu0 %v1397
        %1768 = vmatpush1.bf16.msra.mxu0 %v1396
        %1769 = vmatprep.subr.bf16.mxu0 %v1394
        %1770 = vmatpush1.bf16.msra.mxu0 %v1393
        %1771 = vmatprep.subr.bf16.mxu0 %v1391
        %1772 = vmatpush1.bf16.msra.mxu0 %v1390
        %1773 = vmatprep.subr.bf16.mxu0 %v1388
        %1774 = vmatpush1.bf16.msra.mxu0 %v1387
        %1775 = vmatprep.subr.bf16.mxu0 %v1385
        %1776 = vmatpush1.bf16.msra.mxu0 %v1384
        %1777 = vmatprep.subr.bf16.mxu0 %v1430
        %1778 = vmatpush2.bf16.msra.mxu0 %v1429
        %1779 = vmatprep.subr.bf16.mxu0 %v1427
        %1780 = vmatpush2.bf16.msra.mxu0 %v1426
        %1781 = vmatprep.subr.bf16.mxu0 %v1424
        %1782 = vmatpush2.bf16.msra.mxu0 %v1423
        %1783 = vmatprep.subr.bf16.mxu0 %v1421
        %1784 = vmatpush2.bf16.msra.mxu0 %v1420
        %1785 = vmatprep.subr.bf16.mxu0 %v1418
        %1786 = vmatpush2.bf16.msra.mxu0 %v1417
        %1787 = vmatprep.subr.bf16.mxu0 %v1415
        %1788 = vmatpush2.bf16.msra.mxu0 %v1414
        %1789 = vmatprep.subr.bf16.mxu0 %v1412
        %1790 = vmatpush2.bf16.msra.mxu0 %v1411
        %1791 = vmatprep.subr.bf16.mxu0 %v1409
        %1792 = vmatpush2.bf16.msra.mxu0 %v1408
        %1793 = vmatprep.mubr.bf16.mxu0 %v432
        %1794 = vmatmul.mubr.bf16.gmra.mxu0 %v431
        %v1795 = vpop.f32.mrf.mxu0
        %v1796 = vadd.f32 %v1755, %v1795
        %v1797 = vpop.f32.mrf.mxu0
        %v1798 = vadd.f32 %v1757, %v1797
        %v1799 = vpop.f32.mrf.mxu0
        %v1800 = vpop.f32.mrf.mxu0
        %1801 = vdwg.mxu0
        %1802 = vmatprep.subr.bf16.mxu0 %v1454
        %1803 = vmatpush1.bf16.msra.mxu0 %v1453
        %1804 = vmatprep.subr.bf16.mxu0 %v1451
        %1805 = vmatpush1.bf16.msra.mxu0 %v1450
        %1806 = vmatprep.subr.bf16.mxu0 %v1448
        %1807 = vmatpush1.bf16.msra.mxu0 %v1447
        %1808 = vmatprep.subr.bf16.mxu0 %v1445
        %1809 = vmatpush1.bf16.msra.mxu0 %v1444
        %1810 = vmatprep.subr.bf16.mxu0 %v1442
        %1811 = vmatpush1.bf16.msra.mxu0 %v1441
        %1812 = vmatprep.subr.bf16.mxu0 %v1439
        %1813 = vmatpush1.bf16.msra.mxu0 %v1438
        %1814 = vmatprep.subr.bf16.mxu0 %v1436
        %1815 = vmatpush1.bf16.msra.mxu0 %v1435
        %1816 = vmatprep.subr.bf16.mxu0 %v1433
        %1817 = vmatpush1.bf16.msra.mxu0 %v1432
        %1818 = vmatprep.subr.bf16.mxu0 %v1478
        %1819 = vmatpush2.bf16.msra.mxu0 %v1477
        %1820 = vmatprep.subr.bf16.mxu0 %v1475
        %1821 = vmatpush2.bf16.msra.mxu0 %v1474
        %1822 = vmatprep.subr.bf16.mxu0 %v1472
        %1823 = vmatpush2.bf16.msra.mxu0 %v1471
        %1824 = vmatprep.subr.bf16.mxu0 %v1469
        %1825 = vmatpush2.bf16.msra.mxu0 %v1468
        %1826 = vmatprep.subr.bf16.mxu0 %v1466
        %1827 = vmatpush2.bf16.msra.mxu0 %v1465
        %1828 = vmatprep.subr.bf16.mxu0 %v1463
        %1829 = vmatpush2.bf16.msra.mxu0 %v1462
        %1830 = vmatprep.subr.bf16.mxu0 %v1460
        %1831 = vmatpush2.bf16.msra.mxu0 %v1459
        %1832 = vmatprep.subr.bf16.mxu0 %v1457
        %1833 = vmatpush2.bf16.msra.mxu0 %v1456
        %1834 = vmatprep.mubr.bf16.mxu0 %v434
        %1835 = vmatmul.mubr.bf16.gmra.mxu0 %v433
        %v1836 = vpop.f32.mrf.mxu0
        %v1837 = vadd.f32 %v1796, %v1836
        %v1838 = vpop.f32.mrf.mxu0
        %v1839 = vadd.f32 %v1798, %v1838
        %v1840 = vpop.f32.mrf.mxu0
        %v1841 = vpop.f32.mrf.mxu0
        %1842 = vdwg.mxu0
        %1843 = vmatprep.subr.bf16.mxu0 %v1502
        %1844 = vmatpush1.bf16.msra.mxu0 %v1501
        %1845 = vmatprep.subr.bf16.mxu0 %v1499
        %1846 = vmatpush1.bf16.msra.mxu0 %v1498
        %1847 = vmatprep.subr.bf16.mxu0 %v1496
        %1848 = vmatpush1.bf16.msra.mxu0 %v1495
        %1849 = vmatprep.subr.bf16.mxu0 %v1493
        %1850 = vmatpush1.bf16.msra.mxu0 %v1492
        %1851 = vmatprep.subr.bf16.mxu0 %v1490
        %1852 = vmatpush1.bf16.msra.mxu0 %v1489
        %1853 = vmatprep.subr.bf16.mxu0 %v1487
        %1854 = vmatpush1.bf16.msra.mxu0 %v1486
        %1855 = vmatprep.subr.bf16.mxu0 %v1484
        %1856 = vmatpush1.bf16.msra.mxu0 %v1483
        %1857 = vmatprep.subr.bf16.mxu0 %v1481
        %1858 = vmatpush1.bf16.msra.mxu0 %v1480
        %1859 = vmatprep.subr.bf16.mxu0 %v1526
        %1860 = vmatpush2.bf16.msra.mxu0 %v1525
        %1861 = vmatprep.subr.bf16.mxu0 %v1523
        %1862 = vmatpush2.bf16.msra.mxu0 %v1522
        %1863 = vmatprep.subr.bf16.mxu0 %v1520
        %1864 = vmatpush2.bf16.msra.mxu0 %v1519
        %1865 = vmatprep.subr.bf16.mxu0 %v1517
        %1866 = vmatpush2.bf16.msra.mxu0 %v1516
        %1867 = vmatprep.subr.bf16.mxu0 %v1514
        %1868 = vmatpush2.bf16.msra.mxu0 %v1513
        %1869 = vmatprep.subr.bf16.mxu0 %v1511
        %1870 = vmatpush2.bf16.msra.mxu0 %v1510
        %1871 = vmatprep.subr.bf16.mxu0 %v1508
        %1872 = vmatpush2.bf16.msra.mxu0 %v1507
        %1873 = vmatprep.subr.bf16.mxu0 %v1505
        %1874 = vmatpush2.bf16.msra.mxu0 %v1504
        %1875 = vmatprep.mubr.bf16.mxu0 %v436
        %1876 = vmatmul.mubr.bf16.gmra.mxu0 %v435
        %v1877 = vpop.f32.mrf.mxu0
        %v1878 = vadd.f32 %v1837, %v1877
        %v1879 = vpop.f32.mrf.mxu0
        %v1880 = vadd.f32 %v1839, %v1879
        %v1881 = vpop.f32.mrf.mxu0
        %v1882 = vpop.f32.mrf.mxu0
        %1883 = vdwg.mxu0
        %1884 = vmatprep.subr.bf16.mxu0 0
        %1885 = vmatpush1.bf16.msra.mxu0 %v1359
        %1886 = vmatprep.subr.bf16.mxu0 0
        %1887 = vmatpush1.bf16.msra.mxu0 %v1356
        %1888 = vmatprep.subr.bf16.mxu0 0
        %1889 = vmatpush1.bf16.msra.mxu0 %v1353
        %1890 = vmatprep.subr.bf16.mxu0 0
        %1891 = vmatpush1.bf16.msra.mxu0 %v1350
        %1892 = vmatprep.subr.bf16.mxu0 0
        %1893 = vmatpush1.bf16.msra.mxu0 %v1347
        %1894 = vmatprep.subr.bf16.mxu0 0
        %1895 = vmatpush1.bf16.msra.mxu0 %v1344
        %1896 = vmatprep.subr.bf16.mxu0 0
        %1897 = vmatpush1.bf16.msra.mxu0 %v1341
        %1898 = vmatprep.subr.bf16.mxu0 0
        %1899 = vmatpush1.bf16.msra.mxu0 %v1338
        %1900 = vmatprep.subr.bf16.mxu0 0
        %1901 = vmatpush2.bf16.msra.mxu0 %v1383
        %1902 = vmatprep.subr.bf16.mxu0 0
        %1903 = vmatpush2.bf16.msra.mxu0 %v1380
        %1904 = vmatprep.subr.bf16.mxu0 0
        %1905 = vmatpush2.bf16.msra.mxu0 %v1377
        %1906 = vmatprep.subr.bf16.mxu0 0
        %1907 = vmatpush2.bf16.msra.mxu0 %v1374
        %1908 = vmatprep.subr.bf16.mxu0 0
        %1909 = vmatpush2.bf16.msra.mxu0 %v1371
        %1910 = vmatprep.subr.bf16.mxu0 0
        %1911 = vmatpush2.bf16.msra.mxu0 %v1368
        %1912 = vmatprep.subr.bf16.mxu0 0
        %1913 = vmatpush2.bf16.msra.mxu0 %v1365
        %1914 = vmatprep.subr.bf16.mxu0 0
        %1915 = vmatpush2.bf16.msra.mxu0 %v1362
        %1916 = vmatprep.mubr.bf16.mxu0 %v430
        %1917 = vmatmul.mubr.bf16.gmra.mxu0 %v429
        %v1918 = vpop.f32.mrf.mxu0
        %v1919 = vadd.f32 0.0, %v1918
        %v1920 = vpop.f32.mrf.mxu0
        %v1921 = vpop.f32.mrf.mxu0
        %v1922 = vpop.f32.mrf.mxu0
        %1923 = vdwg.mxu0
        %1924 = vmatprep.subr.bf16.mxu0 0
        %1925 = vmatpush1.bf16.msra.mxu0 %v1407
        %1926 = vmatprep.subr.bf16.mxu0 0
        %1927 = vmatpush1.bf16.msra.mxu0 %v1404
        %1928 = vmatprep.subr.bf16.mxu0 0
        %1929 = vmatpush1.bf16.msra.mxu0 %v1401
        %1930 = vmatprep.subr.bf16.mxu0 0
        %1931 = vmatpush1.bf16.msra.mxu0 %v1398
        %1932 = vmatprep.subr.bf16.mxu0 0
        %1933 = vmatpush1.bf16.msra.mxu0 %v1395
        %1934 = vmatprep.subr.bf16.mxu0 0
        %1935 = vmatpush1.bf16.msra.mxu0 %v1392
        %1936 = vmatprep.subr.bf16.mxu0 0
        %1937 = vmatpush1.bf16.msra.mxu0 %v1389
        %1938 = vmatprep.subr.bf16.mxu0 0
        %1939 = vmatpush1.bf16.msra.mxu0 %v1386
        %1940 = vmatprep.subr.bf16.mxu0 0
        %1941 = vmatpush2.bf16.msra.mxu0 %v1431
        %1942 = vmatprep.subr.bf16.mxu0 0
        %1943 = vmatpush2.bf16.msra.mxu0 %v1428
        %1944 = vmatprep.subr.bf16.mxu0 0
        %1945 = vmatpush2.bf16.msra.mxu0 %v1425
        %1946 = vmatprep.subr.bf16.mxu0 0
        %1947 = vmatpush2.bf16.msra.mxu0 %v1422
        %1948 = vmatprep.subr.bf16.mxu0 0
        %1949 = vmatpush2.bf16.msra.mxu0 %v1419
        %1950 = vmatprep.subr.bf16.mxu0 0
        %1951 = vmatpush2.bf16.msra.mxu0 %v1416
        %1952 = vmatprep.subr.bf16.mxu0 0
        %1953 = vmatpush2.bf16.msra.mxu0 %v1413
        %1954 = vmatprep.subr.bf16.mxu0 0
        %1955 = vmatpush2.bf16.msra.mxu0 %v1410
        %1956 = vmatprep.mubr.bf16.mxu0 %v432
        %1957 = vmatmul.mubr.bf16.gmra.mxu0 %v431
        %v1958 = vpop.f32.mrf.mxu0
        %v1959 = vadd.f32 %v1919, %v1958
        %v1960 = vpop.f32.mrf.mxu0
        %v1961 = vpop.f32.mrf.mxu0
        %v1962 = vpop.f32.mrf.mxu0
        %1963 = vdwg.mxu0
        %1964 = vmatprep.subr.bf16.mxu0 0
        %1965 = vmatpush1.bf16.msra.mxu0 %v1455
        %1966 = vmatprep.subr.bf16.mxu0 0
        %1967 = vmatpush1.bf16.msra.mxu0 %v1452
        %1968 = vmatprep.subr.bf16.mxu0 0
        %1969 = vmatpush1.bf16.msra.mxu0 %v1449
        %1970 = vmatprep.subr.bf16.mxu0 0
        %1971 = vmatpush1.bf16.msra.mxu0 %v1446
        %1972 = vmatprep.subr.bf16.mxu0 0
        %1973 = vmatpush1.bf16.msra.mxu0 %v1443
        %1974 = vmatprep.subr.bf16.mxu0 0
        %1975 = vmatpush1.bf16.msra.mxu0 %v1440
        %1976 = vmatprep.subr.bf16.mxu0 0
        %1977 = vmatpush1.bf16.msra.mxu0 %v1437
        %1978 = vmatprep.subr.bf16.mxu0 0
        %1979 = vmatpush1.bf16.msra.mxu0 %v1434
        %1980 = vmatprep.subr.bf16.mxu0 0
        %1981 = vmatpush2.bf16.msra.mxu0 %v1479
        %1982 = vmatprep.subr.bf16.mxu0 0
        %1983 = vmatpush2.bf16.msra.mxu0 %v1476
        %1984 = vmatprep.subr.bf16.mxu0 0
        %1985 = vmatpush2.bf16.msra.mxu0 %v1473
        %1986 = vmatprep.subr.bf16.mxu0 0
        %1987 = vmatpush2.bf16.msra.mxu0 %v1470
        %1988 = vmatprep.subr.bf16.mxu0 0
        %1989 = vmatpush2.bf16.msra.mxu0 %v1467
        %1990 = vmatprep.subr.bf16.mxu0 0
        %1991 = vmatpush2.bf16.msra.mxu0 %v1464
        %1992 = vmatprep.subr.bf16.mxu0 0
        %1993 = vmatpush2.bf16.msra.mxu0 %v1461
        %1994 = vmatprep.subr.bf16.mxu0 0
        %1995 = vmatpush2.bf16.msra.mxu0 %v1458
        %1996 = vmatprep.mubr.bf16.mxu0 %v434
        %1997 = vmatmul.mubr.bf16.gmra.mxu0 %v433
        %v1998 = vpop.f32.mrf.mxu0
        %v1999 = vadd.f32 %v1959, %v1998
        %v2000 = vpop.f32.mrf.mxu0
        %v2001 = vpop.f32.mrf.mxu0
        %v2002 = vpop.f32.mrf.mxu0
        %2003 = vdwg.mxu0
        %2004 = vmatprep.subr.bf16.mxu0 0
        %2005 = vmatpush1.bf16.msra.mxu0 %v1503
        %2006 = vmatprep.subr.bf16.mxu0 0
        %2007 = vmatpush1.bf16.msra.mxu0 %v1500
        %2008 = vmatprep.subr.bf16.mxu0 0
        %2009 = vmatpush1.bf16.msra.mxu0 %v1497
        %2010 = vmatprep.subr.bf16.mxu0 0
        %2011 = vmatpush1.bf16.msra.mxu0 %v1494
        %2012 = vmatprep.subr.bf16.mxu0 0
        %2013 = vmatpush1.bf16.msra.mxu0 %v1491
        %2014 = vmatprep.subr.bf16.mxu0 0
        %2015 = vmatpush1.bf16.msra.mxu0 %v1488
        %2016 = vmatprep.subr.bf16.mxu0 0
        %2017 = vmatpush1.bf16.msra.mxu0 %v1485
        %2018 = vmatprep.subr.bf16.mxu0 0
        %2019 = vmatpush1.bf16.msra.mxu0 %v1482
        %2020 = vmatprep.subr.bf16.mxu0 0
        %2021 = vmatpush2.bf16.msra.mxu0 %v1527
        %2022 = vmatprep.subr.bf16.mxu0 0
        %2023 = vmatpush2.bf16.msra.mxu0 %v1524
        %2024 = vmatprep.subr.bf16.mxu0 0
        %2025 = vmatpush2.bf16.msra.mxu0 %v1521
        %2026 = vmatprep.subr.bf16.mxu0 0
        %2027 = vmatpush2.bf16.msra.mxu0 %v1518
        %2028 = vmatprep.subr.bf16.mxu0 0
        %2029 = vmatpush2.bf16.msra.mxu0 %v1515
        %2030 = vmatprep.subr.bf16.mxu0 0
        %2031 = vmatpush2.bf16.msra.mxu0 %v1512
        %2032 = vmatprep.subr.bf16.mxu0 0
        %2033 = vmatpush2.bf16.msra.mxu0 %v1509
        %2034 = vmatprep.subr.bf16.mxu0 0
        %2035 = vmatpush2.bf16.msra.mxu0 %v1506
        %2036 = vmatprep.mubr.bf16.mxu0 %v436
        %2037 = vmatmul.mubr.bf16.gmra.mxu0 %v435
        %v2038 = vpop.f32.mrf.mxu0
        %v2039 = vadd.f32 %v1999, %v2038
        %v2040 = vpop.f32.mrf.mxu0
        %v2041 = vpop.f32.mrf.mxu0
        %v2042 = vpop.f32.mrf.mxu0
        %2043 = vdwg.mxu0
        %v2044 = vadd.f32 %v437, %v1878
        %v2045 = vadd.f32 %v438, %v1880
        %v2046 = vadd.f32 %v439, %v2039
        %2047 = vst [vmem:[#allocation2] sm:$0xff] %v2044
        %2048 = vst [vmem:[#allocation2 + $0x8] sm:$0xff] %v2045
        %2049 = vst [vmem:[#allocation2 + $0x10] sm:$0xff] %v2046
        %p2050 = scmp.eq.s32.totalorder %s32, 3
        // Predicated region
        $region81: #{tpu_custom_call.1} parent=47 // pred_check
          %p2051 = pneg %p2050
        $region82: #{tpu_custom_call.1} parent=47 // pred_check_branch
          %2053 = sbr.rel (%p2051) target = $region84
        $region83: #{tpu_custom_call.1} parent=47 // pred_region
          %v2054 = vld [vmem:[#allocation2] sm:$0xff]
          %v2055 = vld [vmem:[#allocation2 + $0x8] sm:$0xff]
          %v2056 = vld [vmem:[#allocation2 + $0x10] sm:$0xff]
          %v2057 = vld [vmem:[#allocation8] sm:$0x7]
          %v2059 = vlaneseq
          %v2060 = vshrl.u32 %v2059, 7
          %v2061 = vsub.s32 0, %v2060
          %v2062 = vrot.slane %v2057, %v2061
          %v2063 = vlaneseq
          %v2064 = vshrl.u32 %v2063, 7
          %v2065 = vsub.s32 1, %v2064
          %v2066 = vrot.slane %v2057, %v2065
          %v2067 = vlaneseq
          %v2068 = vshrl.u32 %v2067, 7
          %v2069 = vsub.s32 2, %v2068
          %v2070 = vrot.slane %v2057, %v2069
          %v2074 = vadd.f32 %v2054, %v2062
          %v2075 = vadd.f32 %v2055, %v2066
          %v2076 = vadd.f32 %v2056, %v2070
          %v2077 = vxor.u32 %v2074, 2147483648
          %v2078 = vmul.f32 %v2077, 1.442695
          %v2079 = vpow.pop %v2078
          %v2080 = vadd.f32 %v2079, 1.0
          %v2081 = vrcp.pop %v2080
          %v2082 = vmul.f32 1.0, %v2081
          %v2083 = vtanh.pop %v2075
          %v2084 = vxor.u32 %v2076, 2147483648
          %v2085 = vmul.f32 %v2084, 1.442695
          %v2086 = vpow.pop %v2085
          %v2087 = vadd.f32 %v2086, 1.0
          %v2088 = vrcp.pop %v2087
          %v2089 = vmul.f32 1.0, %v2088
          %v2090 = vmul.f32 %v2082, %v2083
          %v2091 = vtanh.pop %v2090
          %v2092 = vmul.f32 %v2089, %v2091
          %v2093 = vpack.c.bf16 %v2092, %v2092
          %v2094 = vld [vmem:[#allocation9] sm:$0xff]
          %v2095 = vld [vmem:[#allocation9 + $0x8] sm:$0xf]
          %v2096 = vld [vmem:[#allocation9 + $0xc] sm:$0xff]
          %v2097 = vld [vmem:[#allocation9 + $0x14] sm:$0xf]
          %v2098 = vld [vmem:[#allocation9 + $0x18] sm:$0xff]
          %v2099 = vld [vmem:[#allocation9 + $0x20] sm:$0xf]
          %v2100 = vld [vmem:[#allocation9 + $0x24] sm:$0xff]
          %v2101 = vld [vmem:[#allocation9 + $0x2c] sm:$0xf]
          %v2102 = vld [vmem:[#allocation9 + $0x30] sm:$0xff]
          %v2103 = vld [vmem:[#allocation9 + $0x38] sm:$0xf]
          %v2104 = vld [vmem:[#allocation9 + $0x3c] sm:$0xff]
          %v2105 = vld [vmem:[#allocation9 + $0x44] sm:$0xf]
          %v2106 = vld [vmem:[#allocation9 + $0x48] sm:$0xff]
          %v2107 = vld [vmem:[#allocation9 + $0x50] sm:$0xf]
          %v2108 = vld [vmem:[#allocation9 + $0x54] sm:$0xff]
          %v2109 = vld [vmem:[#allocation9 + $0x5c] sm:$0xf]
          %v2110 = vld [vmem:[#allocation9 + $0x60] sm:$0xff]
          %v2111 = vld [vmem:[#allocation9 + $0x68] sm:$0xf]
          %v2112 = vld [vmem:[#allocation9 + $0x6c] sm:$0xff]
          %v2113 = vld [vmem:[#allocation9 + $0x74] sm:$0xf]
          %v2114 = vld [vmem:[#allocation9 + $0x78] sm:$0xff]
          %v2115 = vld [vmem:[#allocation9 + $0x80] sm:$0xf]
          %v2116 = vld [vmem:[#allocation9 + $0x84] sm:$0xff]
          %v2117 = vld [vmem:[#allocation9 + $0x8c] sm:$0xf]
          %v2118 = vld [vmem:[#allocation9 + $0x90] sm:$0xff]
          %v2119 = vld [vmem:[#allocation9 + $0x98] sm:$0xf]
          %v2120 = vld [vmem:[#allocation9 + $0x9c] sm:$0xff]
          %v2121 = vld [vmem:[#allocation9 + $0xa4] sm:$0xf]
          %v2122 = vld [vmem:[#allocation9 + $0xa8] sm:$0xff]
          %v2123 = vld [vmem:[#allocation9 + $0xb0] sm:$0xf]
          %v2124 = vld [vmem:[#allocation9 + $0xb4] sm:$0xff]
          %v2125 = vld [vmem:[#allocation9 + $0xbc] sm:$0xf]
          %v2126 = vld [vmem:[#allocation11] sm:$0x7]
          %v2128 = vlaneseq
          %v2129 = vshrl.u32 %v2128, 7
          %v2130 = vsub.s32 0, %v2129
          %v2131 = vrot.slane %v2126, %v2130
          %v2132 = vlaneseq
          %v2133 = vshrl.u32 %v2132, 7
          %v2134 = vsub.s32 1, %v2133
          %v2135 = vrot.slane %v2126, %v2134
          %v2136 = vlaneseq
          %v2137 = vshrl.u32 %v2136, 7
          %v2138 = vsub.s32 2, %v2137
          %v2139 = vrot.slane %v2126, %v2138
          %v2175 = vunpack.c.l.b16 %v2094
          %v2176 = vunpack.c.h.b16 %v2094
          %v2177 = vunpack.c.l.b16 %v2095
          %v2178 = vunpack.c.l.b16 %v2096
          %v2179 = vunpack.c.h.b16 %v2096
          %v2180 = vunpack.c.l.b16 %v2097
          %v2181 = vunpack.c.l.b16 %v2098
          %v2182 = vunpack.c.h.b16 %v2098
          %v2183 = vunpack.c.l.b16 %v2099
          %v2184 = vunpack.c.l.b16 %v2100
          %v2185 = vunpack.c.h.b16 %v2100
          %v2186 = vunpack.c.l.b16 %v2101
          %v2187 = vunpack.c.l.b16 %v2102
          %v2188 = vunpack.c.h.b16 %v2102
          %v2189 = vunpack.c.l.b16 %v2103
          %v2190 = vunpack.c.l.b16 %v2104
          %v2191 = vunpack.c.h.b16 %v2104
          %v2192 = vunpack.c.l.b16 %v2105
          %v2193 = vunpack.c.l.b16 %v2106
          %v2194 = vunpack.c.h.b16 %v2106
          %v2195 = vunpack.c.l.b16 %v2107
          %v2196 = vunpack.c.l.b16 %v2108
          %v2197 = vunpack.c.h.b16 %v2108
          %v2198 = vunpack.c.l.b16 %v2109
          %v2199 = vunpack.c.l.b16 %v2110
          %v2200 = vunpack.c.h.b16 %v2110
          %v2201 = vunpack.c.l.b16 %v2111
          %v2202 = vunpack.c.l.b16 %v2112
          %v2203 = vunpack.c.h.b16 %v2112
          %v2204 = vunpack.c.l.b16 %v2113
          %v2205 = vunpack.c.l.b16 %v2114
          %v2206 = vunpack.c.h.b16 %v2114
          %v2207 = vunpack.c.l.b16 %v2115
          %v2208 = vunpack.c.l.b16 %v2116
          %v2209 = vunpack.c.h.b16 %v2116
          %v2210 = vunpack.c.l.b16 %v2117
          %v2211 = vunpack.c.l.b16 %v2118
          %v2212 = vunpack.c.h.b16 %v2118
          %v2213 = vunpack.c.l.b16 %v2119
          %v2214 = vunpack.c.l.b16 %v2120
          %v2215 = vunpack.c.h.b16 %v2120
          %v2216 = vunpack.c.l.b16 %v2121
          %v2217 = vunpack.c.l.b16 %v2122
          %v2218 = vunpack.c.h.b16 %v2122
          %v2219 = vunpack.c.l.b16 %v2123
          %v2220 = vunpack.c.l.b16 %v2124
          %v2221 = vunpack.c.h.b16 %v2124
          %v2222 = vunpack.c.l.b16 %v2125
          %v2223 = vpack.c.b16 %v2178, %v2175
          %v2224 = vpack.c.b16 %v2179, %v2176
          %v2225 = vpack.c.b16 %v2180, %v2177
          %v2226 = vpack.c.b16 %v2184, %v2181
          %v2227 = vpack.c.b16 %v2185, %v2182
          %v2228 = vpack.c.b16 %v2186, %v2183
          %v2229 = vpack.c.b16 %v2190, %v2187
          %v2230 = vpack.c.b16 %v2191, %v2188
          %v2231 = vpack.c.b16 %v2192, %v2189
          %v2232 = vpack.c.b16 %v2196, %v2193
          %v2233 = vpack.c.b16 %v2197, %v2194
          %v2234 = vpack.c.b16 %v2198, %v2195
          %v2235 = vpack.c.b16 %v2202, %v2199
          %v2236 = vpack.c.b16 %v2203, %v2200
          %v2237 = vpack.c.b16 %v2204, %v2201
          %v2238 = vpack.c.b16 %v2208, %v2205
          %v2239 = vpack.c.b16 %v2209, %v2206
          %v2240 = vpack.c.b16 %v2210, %v2207
          %v2241 = vpack.c.b16 %v2214, %v2211
          %v2242 = vpack.c.b16 %v2215, %v2212
          %v2243 = vpack.c.b16 %v2216, %v2213
          %v2244 = vpack.c.b16 %v2220, %v2217
          %v2245 = vpack.c.b16 %v2221, %v2218
          %v2246 = vpack.c.b16 %v2222, %v2219
          %2271 = vmatprep.subr.bf16.mxu0 %v2245
          %2272 = vmatpush1.bf16.msra.mxu0 %v2244
          %2273 = vmatprep.subr.bf16.mxu0 %v2242
          %2274 = vmatpush1.bf16.msra.mxu0 %v2241
          %2275 = vmatprep.subr.bf16.mxu0 %v2239
          %2276 = vmatpush1.bf16.msra.mxu0 %v2238
          %2277 = vmatprep.subr.bf16.mxu0 %v2236
          %2278 = vmatpush1.bf16.msra.mxu0 %v2235
          %2279 = vmatprep.subr.bf16.mxu0 %v2233
          %2280 = vmatpush1.bf16.msra.mxu0 %v2232
          %2281 = vmatprep.subr.bf16.mxu0 %v2230
          %2282 = vmatpush1.bf16.msra.mxu0 %v2229
          %2283 = vmatprep.subr.bf16.mxu0 %v2227
          %2284 = vmatpush1.bf16.msra.mxu0 %v2226
          %2285 = vmatprep.subr.bf16.mxu0 %v2224
          %2286 = vmatpush1.bf16.msra.mxu0 %v2223
          %2287 = vmatprep.subr.bf16.mxu0 0
          %2288 = vmatpush2.bf16.msra.mxu0 0
          %2289 = vmatprep.subr.bf16.mxu0 0
          %2290 = vmatpush2.bf16.msra.mxu0 0
          %2291 = vmatprep.subr.bf16.mxu0 0
          %2292 = vmatpush2.bf16.msra.mxu0 0
          %2293 = vmatprep.subr.bf16.mxu0 0
          %2294 = vmatpush2.bf16.msra.mxu0 0
          %2295 = vmatprep.subr.bf16.mxu0 0
          %2296 = vmatpush2.bf16.msra.mxu0 0
          %2297 = vmatprep.subr.bf16.mxu0 0
          %2298 = vmatpush2.bf16.msra.mxu0 0
          %2299 = vmatprep.subr.bf16.mxu0 0
          %2300 = vmatpush2.bf16.msra.mxu0 0
          %2301 = vmatprep.subr.bf16.mxu0 0
          %2302 = vmatpush2.bf16.msra.mxu0 0
          %2303 = vmatprep.mubr.bf16.mxu0 0
          %2304 = vmatmul.mubr.bf16.gmra.mxu0 %v2093
          %v2305 = vpop.f32.mrf.mxu0
          %v2306 = vadd.f32 %v2131, %v2305
          %v2307 = vpop.f32.mrf.mxu0
          %v2308 = vadd.f32 %v2135, %v2307
          %v2309 = vpop.f32.mrf.mxu0
          %v2310 = vpop.f32.mrf.mxu0
          %2311 = vdwg.mxu0
          %2312 = vmatprep.subr.bf16.mxu0 0
          %2313 = vmatpush1.bf16.msra.mxu0 %v2246
          %2314 = vmatprep.subr.bf16.mxu0 0
          %2315 = vmatpush1.bf16.msra.mxu0 %v2243
          %2316 = vmatprep.subr.bf16.mxu0 0
          %2317 = vmatpush1.bf16.msra.mxu0 %v2240
          %2318 = vmatprep.subr.bf16.mxu0 0
          %2319 = vmatpush1.bf16.msra.mxu0 %v2237
          %2320 = vmatprep.subr.bf16.mxu0 0
          %2321 = vmatpush1.bf16.msra.mxu0 %v2234
          %2322 = vmatprep.subr.bf16.mxu0 0
          %2323 = vmatpush1.bf16.msra.mxu0 %v2231
          %2324 = vmatprep.subr.bf16.mxu0 0
          %2325 = vmatpush1.bf16.msra.mxu0 %v2228
          %2326 = vmatprep.subr.bf16.mxu0 0
          %2327 = vmatpush1.bf16.msra.mxu0 %v2225
          %2328 = vmatprep.subr.bf16.mxu0 0
          %2329 = vmatpush2.bf16.msra.mxu0 0
          %2330 = vmatprep.subr.bf16.mxu0 0
          %2331 = vmatpush2.bf16.msra.mxu0 0
          %2332 = vmatprep.subr.bf16.mxu0 0
          %2333 = vmatpush2.bf16.msra.mxu0 0
          %2334 = vmatprep.subr.bf16.mxu0 0
          %2335 = vmatpush2.bf16.msra.mxu0 0
          %2336 = vmatprep.subr.bf16.mxu0 0
          %2337 = vmatpush2.bf16.msra.mxu0 0
          %2338 = vmatprep.subr.bf16.mxu0 0
          %2339 = vmatpush2.bf16.msra.mxu0 0
          %2340 = vmatprep.subr.bf16.mxu0 0
          %2341 = vmatpush2.bf16.msra.mxu0 0
          %2342 = vmatprep.subr.bf16.mxu0 0
          %2343 = vmatpush2.bf16.msra.mxu0 0
          %2344 = vmatprep.mubr.bf16.mxu0 0
          %2345 = vmatmul.mubr.bf16.gmra.mxu0 %v2093
          %v2346 = vpop.f32.mrf.mxu0
          %v2347 = vadd.f32 %v2139, %v2346
          %v2348 = vpop.f32.mrf.mxu0
          %v2349 = vpop.f32.mrf.mxu0
          %v2350 = vpop.f32.mrf.mxu0
          %2351 = vdwg.mxu0
          %v2352 = vxor.u32 %v2306, 2147483648
          %v2353 = vmul.f32 %v2352, 1.442695
          %v2354 = vpow.pop %v2353
          %v2355 = vadd.f32 %v2354, 1.0
          %v2356 = vrcp.pop %v2355
          %v2357 = vmul.f32 1.0, %v2356
          %v2358 = vtanh.pop %v2308
          %v2359 = vxor.u32 %v2347, 2147483648
          %v2360 = vmul.f32 %v2359, 1.442695
          %v2361 = vpow.pop %v2360
          %v2362 = vadd.f32 %v2361, 1.0
          %v2363 = vrcp.pop %v2362
          %v2364 = vmul.f32 1.0, %v2363
          %v2365 = vmul.f32 %v2357, %v2358
          %v2366 = vtanh.pop %v2365
          %v2367 = vmul.f32 %v2364, %v2366
          %v2368 = vpack.c.bf16 %v2367, %v2367
          %v2369 = vld [vmem:[#allocation12] sm:$0xf]
          %v2370 = vld [vmem:[#allocation12 + $0x4] sm:$0xf]
          %v2371 = vld [vmem:[#allocation12 + $0x8] sm:$0xf]
          %v2372 = vld [vmem:[#allocation12 + $0xc] sm:$0xf]
          %v2373 = vld [vmem:[#allocation12 + $0x10] sm:$0xf]
          %v2374 = vld [vmem:[#allocation12 + $0x14] sm:$0xf]
          %v2375 = vld [vmem:[#allocation12 + $0x18] sm:$0xf]
          %v2376 = vld [vmem:[#allocation12 + $0x1c] sm:$0xf]
          %v2377 = vld [vmem:[#allocation12 + $0x20] sm:$0xf]
          %v2378 = vld [vmem:[#allocation12 + $0x24] sm:$0xf]
          %v2379 = vld [vmem:[#allocation12 + $0x28] sm:$0xf]
          %v2380 = vld [vmem:[#allocation12 + $0x2c] sm:$0xf]
          %v2381 = vld [vmem:[#allocation12 + $0x30] sm:$0xf]
          %v2382 = vld [vmem:[#allocation12 + $0x34] sm:$0xf]
          %v2383 = vld [vmem:[#allocation12 + $0x38] sm:$0xf]
          %v2384 = vld [vmem:[#allocation12 + $0x3c] sm:$0xf]
          %v2385 = vld [vmem:[#allocation14] sm:$0x1]
          %v2387 = vlaneseq
          %v2388 = vshrl.u32 %v2387, 7
          %v2389 = vsub.s32 0, %v2388
          %v2390 = vrot.slane %v2385, %v2389
          %v2408 = vunpack.c.l.b16 %v2369
          %v2409 = vunpack.c.l.b16 %v2370
          %v2410 = vunpack.c.l.b16 %v2371
          %v2411 = vunpack.c.l.b16 %v2372
          %v2412 = vunpack.c.l.b16 %v2373
          %v2413 = vunpack.c.l.b16 %v2374
          %v2414 = vunpack.c.l.b16 %v2375
          %v2415 = vunpack.c.l.b16 %v2376
          %v2416 = vunpack.c.l.b16 %v2377
          %v2417 = vunpack.c.l.b16 %v2378
          %v2418 = vunpack.c.l.b16 %v2379
          %v2419 = vunpack.c.l.b16 %v2380
          %v2420 = vunpack.c.l.b16 %v2381
          %v2421 = vunpack.c.l.b16 %v2382
          %v2422 = vunpack.c.l.b16 %v2383
          %v2423 = vunpack.c.l.b16 %v2384
          %v2424 = vpack.c.b16 %v2409, %v2408
          %v2425 = vpack.c.b16 %v2411, %v2410
          %v2426 = vpack.c.b16 %v2413, %v2412
          %v2427 = vpack.c.b16 %v2415, %v2414
          %v2428 = vpack.c.b16 %v2417, %v2416
          %v2429 = vpack.c.b16 %v2419, %v2418
          %v2430 = vpack.c.b16 %v2421, %v2420
          %v2431 = vpack.c.b16 %v2423, %v2422
          %2440 = vmatprep.subr.bf16.mxu0 0
          %2441 = vmatpush1.bf16.msra.mxu0 %v2431
          %2442 = vmatprep.subr.bf16.mxu0 0
          %2443 = vmatpush1.bf16.msra.mxu0 %v2430
          %2444 = vmatprep.subr.bf16.mxu0 0
          %2445 = vmatpush1.bf16.msra.mxu0 %v2429
          %2446 = vmatprep.subr.bf16.mxu0 0
          %2447 = vmatpush1.bf16.msra.mxu0 %v2428
          %2448 = vmatprep.subr.bf16.mxu0 0
          %2449 = vmatpush1.bf16.msra.mxu0 %v2427
          %2450 = vmatprep.subr.bf16.mxu0 0
          %2451 = vmatpush1.bf16.msra.mxu0 %v2426
          %2452 = vmatprep.subr.bf16.mxu0 0
          %2453 = vmatpush1.bf16.msra.mxu0 %v2425
          %2454 = vmatprep.subr.bf16.mxu0 0
          %2455 = vmatpush1.bf16.msra.mxu0 %v2424
          %2456 = vmatprep.subr.bf16.mxu0 0
          %2457 = vmatpush2.bf16.msra.mxu0 0
          %2458 = vmatprep.subr.bf16.mxu0 0
          %2459 = vmatpush2.bf16.msra.mxu0 0
          %2460 = vmatprep.subr.bf16.mxu0 0
          %2461 = vmatpush2.bf16.msra.mxu0 0
          %2462 = vmatprep.subr.bf16.mxu0 0
          %2463 = vmatpush2.bf16.msra.mxu0 0
          %2464 = vmatprep.subr.bf16.mxu0 0
          %2465 = vmatpush2.bf16.msra.mxu0 0
          %2466 = vmatprep.subr.bf16.mxu0 0
          %2467 = vmatpush2.bf16.msra.mxu0 0
          %2468 = vmatprep.subr.bf16.mxu0 0
          %2469 = vmatpush2.bf16.msra.mxu0 0
          %2470 = vmatprep.subr.bf16.mxu0 0
          %2471 = vmatpush2.bf16.msra.mxu0 0
          %2472 = vmatprep.mubr.bf16.mxu0 0
          %2473 = vmatmul.mubr.bf16.gmra.mxu0 %v2368
          %v2474 = vpop.f32.mrf.mxu0
          %v2475 = vadd.f32 %v2390, %v2474
          %v2476 = vpop.f32.mrf.mxu0
          %v2477 = vpop.f32.mrf.mxu0
          %v2478 = vpop.f32.mrf.mxu0
          %2479 = vdwg.mxu0
          %2480 = vst [vmem:[#allocation15] sm:$0xff] %v2475
        $region84: #{tpu_custom_call.1} parent=47 // pred_fallthru
          _
        // Predicated region
        $region85: #{tpu_custom_call.1} parent=47 // pred_check
          %p2481 = pneg %p216
        $region86: #{tpu_custom_call.1} parent=47 // pred_check_branch
          %2483 = sbr.rel (%p2481) target = $region88
        $region87: #{tpu_custom_call.1} parent=47 // pred_region
          %s2485 = ssub.s32 128, 128
          %2486 = vsyncadd [#allocation5], %s2485
          %s2487 = smul.addr %s31, 128
          %s2488 = scalar_lea.hbm %s7, %s2487
          %s2490 = sshll.u32 [#allocation15], 4
          %s2491 = int_to_ptr.vmem [resolvable:$true] %s2490
          %2493 = dma.vmem_to_hbm [thread:$0]  %s2491, 128, %s2488, [#allocation5]
        $region88: #{tpu_custom_call.1} parent=47 // pred_fallthru
          _
        // Predicated region
        $region89: #{tpu_custom_call.1} parent=47 // pred_check
          %p2494 = pneg %p216
        $region90: #{tpu_custom_call.1} parent=47 // pred_check_branch
          %2496 = sbr.rel (%p2494) target = $region92
        $region91: #{tpu_custom_call.1} parent=47 // pred_region
          %2497 = dma.done [#allocation5], 128
        $region92: #{tpu_custom_call.1} parent=47 // pred_fallthru
          _
      $region48: #{tpu_custom_call.1} parent=5 // pred_fallthru
        _
      %p2498 = scmp.le.s32.totalorder 2, %s22
      // Predicated region
      $region93: #{tpu_custom_call.1} parent=5 // pred_check
        %p2499 = pneg %p2498
      $region94: #{tpu_custom_call.1} parent=5 // pred_check_branch
        %2501 = sbr.rel (%p2499) target = $region96
      $region95: #{tpu_custom_call.1} parent=5 // pred_region
        %s2502 = ssub.s32 %s22, 2
      $region96: #{tpu_custom_call.1} parent=5 // pred_fallthru
        _
    $region6: #{tpu_custom_call.1} parent=1 // loop_footer
      %s26 = sadd.s32 1, %s22
    $region7: #{tpu_custom_call.1} parent=1 // loop_footer_branch
      %21 = sbr.rel target = $region3
    $region8: #{tpu_custom_call.1} parent=1 // loop_exit
      _
    %2503 = vsyncpa [#allocation4], 1
    %s2504 = scalar_lea.sflag [#allocation4], 1
    %2505 = vsyncpa %s2504, 1
    %2506 = vsyncpa [#allocation7], 1
    %s2507 = scalar_lea.sflag [#allocation7], 1
    %2508 = vsyncpa %s2507, 1
    %2509 = vsyncpa [#allocation10], 1
    %2510 = vsyncpa [#allocation13], 1
    %2511 = vsyncpa [#allocation5], 1
    %s2512 = scalar_lea.sflag [#allocation5], 1
    %2513 = vsyncpa %s2512, 1

</llo_original>
